<compile_context>
chip_gen: v7x
topology: tpu7x:2x2x1
jax: 0.10.0
libtpu: 0.0.40
codegen_flags: <defaults>
</compile_context>

<pallas_src>
import functools
import math

import jax
import jax.numpy as jnp
from jax.experimental import pallas as pl
from jax.experimental.pallas import tpu as pltpu


def _round_up(x, m):
    return ((x + m - 1) // m) * m


def _choose_tiles(n, tile_m=512, tile_k=512):
    """Row / reduction tile sizes for the (padded) N x N adjacency."""
    # Keep >= 2 row tiles when possible so the "parallel" axis can shard across
    # both TensorCores on v7x; row tile rounded to 16 (bf16 sublane packing).
    half_rows = _round_up(max((n + 1) // 2, 16), 16)
    tm = min(_round_up(tile_m, 16), half_rows)
    tk = min(tile_k, _round_up(n, 128))
    n_rows = _round_up(n, tm)
    n_cols = _round_up(n, tk)
    return tm, tk, n_rows, n_cols


def gcn_aggregate_kernel(a_ref, xw_ref, out_ref, acc_ref, *, tile_k):
    """One (row-tile, k-tile) step of  out = relu(A @ XW).

    Grid axis 0 = row tiles of A / out ("parallel"); axis 1 = reduction over
    A's columns ("arbitrary") into the resident f32 accumulator.  XW is a
    single VMEM-resident block; the current k-slab is sliced in-kernel.
    """
    k = pl.program_id(1)

    @pl.when(k == 0)
    def _():
        acc_ref[...] = jnp.zeros_like(acc_ref)

    k_start = pl.multiple_of(k * tile_k, tile_k)
    # bf16 x bf16 MXU matmul with f32 accumulation.
    acc_ref[...] += jnp.dot(
        a_ref[...],
        xw_ref[pl.ds(k_start, tile_k), :],
        preferred_element_type=jnp.float32,
    )

    @pl.when(k == pl.num_programs(1) - 1)
    def _():
        out_ref[...] = jnp.maximum(acc_ref[...], 0.0).astype(out_ref.dtype)


def gcn_layer_forward(X, a_padded, W, *, n, tile_m, tile_k):
    """relu(A @ (X @ W)); a_padded is the pre-padded bf16 normalized adjacency.

    GCN_Model always constructs its layers with bias=False, so no bias operand
    is plumbed into the kernel.
    """
    out_dim = W.shape[1]
    n_rows, n_cols = a_padded.shape

    # X @ W is negligible vs A @ XW -> plain XLA dot (f32, fuses under jit).
    XW = jnp.dot(X.astype(jnp.float32), W.astype(jnp.float32))

    # Lane-dense, VMEM-resident XW: cast then pad (bf16).
    d_pad = _round_up(out_dim, 128)
    xw_p = jnp.pad(XW.astype(jnp.bfloat16),
                   ((0, n_cols - n), (0, d_pad - out_dim)))

    grid = (n_rows // tile_m, n_cols // tile_k)

    cost = pl.CostEstimate(
        flops=2 * n_rows * n_cols * d_pad,
        transcendentals=0,
        bytes_accessed=(a_padded.size * 2 + xw_p.size * 2 + n_rows * d_pad * 2),
    )

    # VMEM budget: double-buffered bf16 A tile + resident bf16 XW (2 bufs)
    # + double-buffered bf16 out tile + f32 accumulator.  Cap for v7x (64 MiB).
    vmem_bytes = (2 * tile_m * tile_k * 2
                  + 2 * n_cols * d_pad * 2
                  + 2 * tile_m * d_pad * 2
                  + tile_m * d_pad * 4)
    vmem_limit = int(min(max(2 * vmem_bytes, 32 * 1024 * 1024),
                         48 * 1024 * 1024))

    out_p = pl.pallas_call(
        functools.partial(gcn_aggregate_kernel, tile_k=tile_k),
        out_shape=jax.ShapeDtypeStruct((n_rows, d_pad), jnp.bfloat16),
        grid_spec=pltpu.PrefetchScalarGridSpec(
            num_scalar_prefetch=0,
            grid=grid,
            in_specs=[
                # A: one (row-tile, k-tile) block per step.
                pl.BlockSpec((tile_m, tile_k), lambda i, k: (i, k)),
                # XW: single full block, constant index -> stays VMEM-resident.
                pl.BlockSpec((n_cols, d_pad), lambda i, k: (0, 0)),
            ],
            out_specs=pl.BlockSpec((tile_m, d_pad), lambda i, k: (i, 0)),
            scratch_shapes=[pltpu.VMEM((tile_m, d_pad), jnp.float32)],
        ),
        compiler_params=pltpu.CompilerParams(
            dimension_semantics=("parallel", "arbitrary"),
            vmem_limit_bytes=vmem_limit,
        ),
        cost_estimate=cost,
    )(a_padded, xw_p)

    return out_p[:n, :out_dim].astype(jnp.float32)


def preprocess_adj(adj):
    """Standard GCN renormalization: D^-1/2 (A + I) D^-1/2, computed densely.

    # TODO(synk): preprocess_adj / get_sparse_input are not given in the spec;
    # this is the standard Kipf&Welling normalization and the sparse adjacency
    # is handled densely (torch.sparse.mm(A, X) == dense A @ X mathematically).
    """
    n = adj.shape[0]
    a = adj.astype(jnp.float32) + jnp.eye(n, dtype=jnp.float32)
    deg = jnp.sum(a, axis=1)
    d_inv_sqrt = jnp.where(deg > 0, 1.0 / jnp.sqrt(deg), 0.0)
    return a * d_inv_sqrt[:, None] * d_inv_sqrt[None, :]


def gcn_model_forward(features, adj, weights, enhanced_message_matrix=None):
    """GCN_Model.forward: returns (log_softmax(X, 1), X, layerwise_feat_list)."""
    n = features.shape[0]
    A = preprocess_adj(adj)

    # Prep the adjacency ONCE for all layers: cast to bf16, then pad.
    tile_m, tile_k, n_rows, n_cols = _choose_tiles(n)
    a_padded = jnp.pad(A.astype(jnp.bfloat16),
                       ((0, n_rows - n), (0, n_cols - n)))

    X = features.astype(jnp.float32)
    layerwise_feat_list = []
    n_layers = len(weights)
    for i, W in enumerate(weights):
        if (enhanced_message_matrix is not None and i != 0
                and i != n_layers - 1):
            X = jnp.dot(enhanced_message_matrix, X)
        # TODO(synk): dropout / sparse_dropout are identity in eval mode
        # (training=False) and are intentionally omitted.
        X = gcn_layer_forward(X, a_padded, W, n=n,
                              tile_m=tile_m, tile_k=tile_k)
        layerwise_feat_list.append(X)
    return jax.nn.log_softmax(X, axis=1), X, layerwise_feat_list


def init_gcn_weights(key, dim_list):
    """kaiming_uniform_ on the raw (in_dim, out_dim) parameter `lin`.

    PyTorch's _calculate_fan_in_and_fan_out on a (in_dim, out_dim) tensor uses
    fan_in = size(1) = out_dim (this module does NOT use nn.Linear's (out, in)
    layout), so bound = sqrt(6 / out_dim).  Init-only; does not affect kernel.
    """
    weights = []
    keys = jax.random.split(key, len(dim_list) - 1)
    for k, (din, dout) in zip(keys, zip(dim_list[:-1], dim_list[1:])):
        bound = math.sqrt(6.0 / dout)
        weights.append(
            jax.random.uniform(k, (din, dout), jnp.float32,
                               minval=-bound, maxval=bound))
    return weights


if __name__ == "__main__":
    # Small GCN: 512 nodes, dims 64 -> 128 -> 16 (two layers), random graph.
    N = 512
    dim_list = [64, 128, 16]

    key = jax.random.PRNGKey(0)
    kx, ka, kw = jax.random.split(key, 3)

    features = jax.random.normal(kx, (N, dim_list[0]), dtype=jnp.float32)
    adj = (jax.random.uniform(ka, (N, N)) < 0.05).astype(jnp.float32)
    adj = jnp.maximum(adj, adj.T)  # symmetric unweighted adjacency

    weights = init_gcn_weights(kw, dim_list)

    # jit the whole model forward so wrapper pads/casts/slices fuse and the
    # one-time A prep is not re-dispatched eagerly.
    model_fwd = jax.jit(gcn_model_forward)
    log_probs, X_out, feats = model_fwd(features, adj, weights)
    jax.block_until_ready(log_probs)

    # Pure-JAX reference with matching bf16-operand / f32-accumulate /
    # bf16-output numerics.
    def ref_forward(features, adj, weights):
        A = preprocess_adj(adj).astype(jnp.bfloat16).astype(jnp.float32)
        X = features.astype(jnp.float32)
        ref_feats = []
        for W in weights:
            XW = jnp.dot(X, W).astype(jnp.bfloat16).astype(jnp.float32)
            Xagg = jnp.dot(A, XW)
            X = jnp.maximum(Xagg, 0.0).astype(jnp.bfloat16).astype(jnp.float32)
            ref_feats.append(X)
        return jax.nn.log_softmax(X, axis=1), X, ref_feats

    ref_lp, ref_X, ref_feats = ref_forward(features, adj, weights)

    assert log_probs.shape == (N, dim_list[-1])
    assert X_out.shape == (N, dim_list[-1])
    assert len(feats) == len(dim_list) - 1
    for f, rf in zip(feats, ref_feats):
        assert jnp.allclose(f, rf, atol=1e-2, rtol=1e-2)
    assert jnp.allclose(X_out, ref_X, atol=1e-2, rtol=1e-2)
    assert jnp.allclose(log_probs, ref_lp, atol=1e-2, rtol=1e-2)

    print("KERNEL_OK")
</pallas_src>

<mosaic_0001>
module attributes {stable_mosaic.version = 11 : i64} {
  func.func @gcn_aggregate_kernel(%arg0: i32, %arg1: i32, %arg2: memref<256x512xbf16, #tpu.memory_space<vmem>>, %arg3: memref<512x128xbf16, #tpu.memory_space<vmem>>, %arg4: memref<256x128xbf16, #tpu.memory_space<vmem>>, %arg5: memref<256x128xf32, #tpu.memory_space<vmem>>) attributes {dimension_semantics = [#tpu.dimension_semantics<parallel>, #tpu.dimension_semantics<arbitrary>], iteration_bounds = array<i64: 2, 1>, scalar_prefetch = 0 : i64, scratch_operands = 1 : i64, tpu.core_type = #tpu.core_type<tc>, window_params = [{transform_indices = @transform_0, window_bounds = array<i64: 256, 512>}, {pipeline_mode = #tpu.pipeline_mode<synchronous>, transform_indices = @transform_1, window_bounds = array<i64: 512, 128>}, {transform_indices = @transform_2, window_bounds = array<i64: 256, 128>}]} {
    %c0_i32 = arith.constant 0 : i32
    %0 = arith.cmpi eq, %arg1, %c0_i32 : i32
    %1 = arith.extui %0 : i1 to i32
    %c0_i32_0 = arith.constant 0 : i32
    %2 = arith.cmpi ne, %1, %c0_i32_0 : i32
    scf.if %2 {
      %cst_9 = arith.constant 0.000000e+00 : f32
      %15 = vector.broadcast %cst_9 : f32 to vector<256x128xf32>
      %c0_10 = arith.constant 0 : index
      %c0_11 = arith.constant 0 : index
      %16 = vector.load %arg5[%c0_10, %c0_11] : memref<256x128xf32, #tpu.memory_space<vmem>>, vector<256x128xf32>
      tpu.vector_store %arg5[%c0_10, %c0_11], %15 {strides = array<i32>} : memref<256x128xf32, #tpu.memory_space<vmem>>, vector<256x128xf32>,
    } else {
    }
    %c512_i32 = arith.constant 512 : i32
    %3 = arith.muli %arg1, %c512_i32 : i32
    %4 = tpu.assume_multiple %3, 512 : i32
    %c0 = arith.constant 0 : index
    %c0_1 = arith.constant 0 : index
    %5 = vector.load %arg5[%c0, %c0_1] : memref<256x128xf32, #tpu.memory_space<vmem>>, vector<256x128xf32>
    %c0_2 = arith.constant 0 : index
    %c0_3 = arith.constant 0 : index
    %6 = vector.load %arg2[%c0_2, %c0_3] : memref<256x512xbf16, #tpu.memory_space<vmem>>, vector<256x512xbf16>
    %7 = arith.index_cast %4 : i32 to index
    %c0_4 = arith.constant 0 : index
    %8 = vector.load %arg3[%7, %c0_4] : memref<512x128xbf16, #tpu.memory_space<vmem>>, vector<512x128xbf16>
    %cst = arith.constant dense<0.000000e+00> : vector<256x128xf32>
    %9 = tpu.matmul %6, %8, %cst {dimension_numbers = #tpu.dot_dimension_numbers<[1], [0], [0], [1], [0, 0, 1, 1], [], []>} : vector<256x512xbf16>, vector<512x128xbf16>, vector<256x128xf32> -> vector<256x128xf32>
    %10 = arith.addf %5, %9 : vector<256x128xf32>
    %c0_5 = arith.constant 0 : index
    %c0_6 = arith.constant 0 : index
    %11 = vector.load %arg5[%c0_5, %c0_6] : memref<256x128xf32, #tpu.memory_space<vmem>>, vector<256x128xf32>
    tpu.vector_store %arg5[%c0_5, %c0_6], %10 {strides = array<i32>} : memref<256x128xf32, #tpu.memory_space<vmem>>, vector<256x128xf32>,
    %c0_i32_7 = arith.constant 0 : i32
    %12 = arith.cmpi eq, %arg1, %c0_i32_7 : i32
    %13 = arith.extui %12 : i1 to i32
    %c0_i32_8 = arith.constant 0 : i32
    %14 = arith.cmpi ne, %13, %c0_i32_8 : i32
    scf.if %14 {
      %c0_9 = arith.constant 0 : index
      %c0_10 = arith.constant 0 : index
      %15 = vector.load %arg5[%c0_9, %c0_10] : memref<256x128xf32, #tpu.memory_space<vmem>>, vector<256x128xf32>
      %cst_11 = arith.constant 0.000000e+00 : f32
      %16 = vector.broadcast %cst_11 : f32 to vector<256x128xf32>
      %17 = arith.maximumf %15, %16 : vector<256x128xf32>
      %18 = arith.truncf %17 : vector<256x128xf32> to vector<256x128xbf16>
      %c0_12 = arith.constant 0 : index
      %c0_13 = arith.constant 0 : index
      %19 = vector.load %arg4[%c0_12, %c0_13] : memref<256x128xbf16, #tpu.memory_space<vmem>>, vector<256x128xbf16>
      tpu.vector_store %arg4[%c0_12, %c0_13], %18 {strides = array<i32>} : memref<256x128xbf16, #tpu.memory_space<vmem>>, vector<256x128xbf16>,
    } else {
    }
    return
  }
  func.func @transform_0(%arg0: i32, %arg1: i32) -> (i32, i32) {
    %c0_i32 = arith.constant 0 : i32
    return %arg0, %arg1 : i32, i32
  }
  func.func @transform_1(%arg0: i32, %arg1: i32) -> (i32, i32) {
    %c0_i32 = arith.constant 0 : i32
    %c0_i32_0 = arith.constant 0 : i32
    %c0_i32_1 = arith.constant 0 : i32
    return %c0_i32, %c0_i32_0 : i32, i32
  }
  func.func @transform_2(%arg0: i32, %arg1: i32) -> (i32, i32) {
    %c0_i32 = arith.constant 0 : i32
    %c0_i32_0 = arith.constant 0 : i32
    return %arg0, %c0_i32 : i32, i32
  }
}

module attributes {stable_mosaic.version = 11 : i64} {
  func.func @gcn_aggregate_kernel(%arg0: i32, %arg1: i32, %arg2: memref<256x512xbf16, #tpu.memory_space<vmem>>, %arg3: memref<512x128xbf16, #tpu.memory_space<vmem>>, %arg4: memref<256x128xbf16, #tpu.memory_space<vmem>>, %arg5: memref<256x128xf32, #tpu.memory_space<vmem>>) attributes {dimension_semantics = [#tpu.dimension_semantics<parallel>, #tpu.dimension_semantics<arbitrary>], iteration_bounds = array<i64: 2, 1>, scalar_prefetch = 0 : i64, scratch_operands = 1 : i64, tpu.core_type = #tpu.core_type<tc>, window_params = [{transform_indices = @transform_0, window_bounds = array<i64: 256, 512>}, {pipeline_mode = #tpu.pipeline_mode<synchronous>, transform_indices = @transform_1, window_bounds = array<i64: 512, 128>}, {transform_indices = @transform_2, window_bounds = array<i64: 256, 128>}]} {
    %c0_i32 = arith.constant 0 : i32
    %0 = arith.cmpi eq, %arg1, %c0_i32 : i32
    %1 = arith.extui %0 : i1 to i32
    %c0_i32_0 = arith.constant 0 : i32
    %2 = arith.cmpi ne, %1, %c0_i32_0 : i32
    scf.if %2 {
      %cst_9 = arith.constant 0.000000e+00 : f32
      %15 = vector.broadcast %cst_9 : f32 to vector<256x128xf32>
      %c0_10 = arith.constant 0 : index
      %c0_11 = arith.constant 0 : index
      %16 = vector.load %arg5[%c0_10, %c0_11] : memref<256x128xf32, #tpu.memory_space<vmem>>, vector<256x128xf32>
      tpu.vector_store %arg5[%c0_10, %c0_11], %15 {strides = array<i32>} : memref<256x128xf32, #tpu.memory_space<vmem>>, vector<256x128xf32>,
    } else {
    }
    %c512_i32 = arith.constant 512 : i32
    %3 = arith.muli %arg1, %c512_i32 : i32
    %4 = tpu.assume_multiple %3, 512 : i32
    %c0 = arith.constant 0 : index
    %c0_1 = arith.constant 0 : index
    %5 = vector.load %arg5[%c0, %c0_1] : memref<256x128xf32, #tpu.memory_space<vmem>>, vector<256x128xf32>
    %c0_2 = arith.constant 0 : index
    %c0_3 = arith.constant 0 : index
    %6 = vector.load %arg2[%c0_2, %c0_3] : memref<256x512xbf16, #tpu.memory_space<vmem>>, vector<256x512xbf16>
    %7 = arith.index_cast %4 : i32 to index
    %c0_4 = arith.constant 0 : index
    %8 = vector.load %arg3[%7, %c0_4] : memref<512x128xbf16, #tpu.memory_space<vmem>>, vector<512x128xbf16>
    %cst = arith.constant dense<0.000000e+00> : vector<256x128xf32>
    %9 = tpu.matmul %6, %8, %cst {dimension_numbers = #tpu.dot_dimension_numbers<[1], [0], [0], [1], [0, 0, 1, 1], [], []>} : vector<256x512xbf16>, vector<512x128xbf16>, vector<256x128xf32> -> vector<256x128xf32>
    %10 = arith.addf %5, %9 : vector<256x128xf32>
    %c0_5 = arith.constant 0 : index
    %c0_6 = arith.constant 0 : index
    %11 = vector.load %arg5[%c0_5, %c0_6] : memref<256x128xf32, #tpu.memory_space<vmem>>, vector<256x128xf32>
    tpu.vector_store %arg5[%c0_5, %c0_6], %10 {strides = array<i32>} : memref<256x128xf32, #tpu.memory_space<vmem>>, vector<256x128xf32>,
    %c0_i32_7 = arith.constant 0 : i32
    %12 = arith.cmpi eq, %arg1, %c0_i32_7 : i32
    %13 = arith.extui %12 : i1 to i32
    %c0_i32_8 = arith.constant 0 : i32
    %14 = arith.cmpi ne, %13, %c0_i32_8 : i32
    scf.if %14 {
      %c0_9 = arith.constant 0 : index
      %c0_10 = arith.constant 0 : index
      %15 = vector.load %arg5[%c0_9, %c0_10] : memref<256x128xf32, #tpu.memory_space<vmem>>, vector<256x128xf32>
      %cst_11 = arith.constant 0.000000e+00 : f32
      %16 = vector.broadcast %cst_11 : f32 to vector<256x128xf32>
      %17 = arith.maximumf %15, %16 : vector<256x128xf32>
      %18 = arith.truncf %17 : vector<256x128xf32> to vector<256x128xbf16>
      %c0_12 = arith.constant 0 : index
      %c0_13 = arith.constant 0 : index
      %19 = vector.load %arg4[%c0_12, %c0_13] : memref<256x128xbf16, #tpu.memory_space<vmem>>, vector<256x128xbf16>
      tpu.vector_store %arg4[%c0_12, %c0_13], %18 {strides = array<i32>} : memref<256x128xbf16, #tpu.memory_space<vmem>>, vector<256x128xbf16>,
    } else {
    }
    return
  }
  func.func @transform_0(%arg0: i32, %arg1: i32) -> (i32, i32) {
    %c0_i32 = arith.constant 0 : i32
    return %arg0, %arg1 : i32, i32
  }
  func.func @transform_1(%arg0: i32, %arg1: i32) -> (i32, i32) {
    %c0_i32 = arith.constant 0 : i32
    %c0_i32_0 = arith.constant 0 : i32
    %c0_i32_1 = arith.constant 0 : i32
    return %c0_i32, %c0_i32_0 : i32, i32
  }
  func.func @transform_2(%arg0: i32, %arg1: i32) -> (i32, i32) {
    %c0_i32 = arith.constant 0 : i32
    %c0_i32_0 = arith.constant 0 : i32
    return %arg0, %c0_i32 : i32, i32
  }
}

</mosaic_0001>

<llo_original>
// kernel: gcn_model_forward.2
$region0: #{gcn_model_forward.2}
  #allocation0 [shape = 'u32[]', space=smem, size = 0x4, offset = 0x4, fixed_abs, tag = 'smem constant byte address 0x4 - core index']
  #allocation1 [shape = 'u32[144,128]{1,0:T(1,128)}', space=vmem, size = 0x12000, scoped, tag = 'internal scratch']
  #allocation2 [shape = 'f32[256,128]{1,0:T(8,128)}', space=vmem, size = 0x20000, scoped, tag = 'scratch operand']
  %s0 = inlined_call_operand.vmem [shape: bf16[512,512], index: 0, kind: input, shape index: {}]
  %s1 = inlined_call_operand.vmem [shape: bf16[512,128], index: 1, kind: input, shape index: {}]
  %s2 = inlined_call_operand.vmem [shape: bf16[512,128], index: 2, kind: output, shape index: {}]
  %s3 = sld [smem:[#allocation0]]
  $region49: #{gcn_model_forward.2} parent=0
    _
  %s5 = ssub.s32 1, %s3
  %s6 = scalar_select 0, %s5, %s3
  loop: start=0, step=1, limit=4
  $region2: #{gcn_model_forward.2} parent=0 // loop_pre_header
    _
  $region3: #{gcn_model_forward.2} parent=0 // loop_header
    %s8 = sphi 0, %s12
    %p9 = scmp.ge.s32.totalorder %s8, 4
    %s15 = sphi 0, %s27
    %s16 = sphi 0, %s23
    %s17 = sphi 0, %s15
    %s18 = sphi 0, %s16
    %s19 = sphi 0, %s17
    %s20 = sphi 0, %s18
    %s32 = sphi 0, %s34
    %s35 = sphi 0, %s32
    %s36 = sphi 0, %s35
    %s52 = sphi 0, %s36
    %s56 = sphi 0, %s56
    %s58 = sphi 0, %s56
    %s59 = sphi 0, %s58
    %s73 = sphi 0, %s59
    %s79 = sphi 0, %s81
    %s82 = sphi 0, %s79
    %s83 = sphi 0, %s82
    %s99 = sphi 0, %s83
  $region4: #{gcn_model_forward.2} parent=0 // loop_header_branch
    %11 = sbr.rel (%p9) target = $region8
  $region5: #{gcn_model_forward.2} parent=0 // loop_body
    %s13 = ssub.s32 %s8, 1
    %s14 = ssub.s32 %s8, 2
    %s21 = sadd.s32 1, %s16
    %p22 = scmp.ge.s32.totalorder %s21, 1
    %s23 = scalar_select %p22, 0, %s21
    %s24 = sadd.s32 1, %s15
    %s25 = scalar_select %p22, %s24, %s15
    %p26 = scmp.ge.s32.totalorder %s25, 2
    %s27 = scalar_select %p26, 0, %s25
    %s28 = ssub.s32 %s15, %s27
    %s29 = ssub.s32 %s16, %s23
    %s30 = sor.u32 %s28, %s29
    %p31 = scmp.eq.s32.totalorder %s30, 0
    %s33 = sadd.s32 %s32, 1
    %s34 = scalar_select %p31, %s32, %s33
    %p37 = pneg %p31
    %p38 = scmp.eq.s32.totalorder %s8, 1
    %p39 = por %p37, %p38
    %p40 = scmp.ne.s32.totalorder %s32, %s35
    %p41 = scmp.eq.s32.totalorder %s8, 0
    %p42 = por %p40, %p41
    %p43 = scmp.ne.s32.totalorder %s32, %s35
    %p44 = scmp.eq.s32.totalorder %s13, 1
    %p45 = por %p43, %p44
    %p46 = scmp.ne.s32.totalorder %s35, %s36
    %p47 = scmp.eq.s32.totalorder %s13, 0
    %p48 = por %p46, %p47
    %p49 = scmp.ne.s32.totalorder %s35, %s36
    %p50 = scmp.eq.s32.totalorder %s14, 1
    %p51 = por %p49, %p50
    %p53 = scmp.ne.s32.totalorder %s36, %s52
    %p54 = scmp.eq.s32.totalorder %s14, 0
    %p55 = por %p53, %p54
    %s57 = sadd.s32 %s56, 1
    %p60 = scmp.eq.s32.totalorder %s8, 1
    %p61 = scmp.ne.s32.totalorder %s56, %s58
    %p62 = scmp.eq.s32.totalorder %s8, 0
    %p63 = por %p61, %p62
    %p64 = scmp.ne.s32.totalorder %s56, %s58
    %p65 = scmp.eq.s32.totalorder %s13, 1
    %p66 = por %p64, %p65
    %p67 = scmp.ne.s32.totalorder %s58, %s59
    %p68 = scmp.eq.s32.totalorder %s13, 0
    %p69 = por %p67, %p68
    %p70 = scmp.ne.s32.totalorder %s58, %s59
    %p71 = scmp.eq.s32.totalorder %s14, 1
    %p72 = por %p70, %p71
    %p74 = scmp.ne.s32.totalorder %s59, %s73
    %p75 = scmp.eq.s32.totalorder %s14, 0
    %p76 = por %p74, %p75
    %s77 = ssub.s32 %s15, %s27
    %p78 = scmp.eq.s32.totalorder %s77, 0
    %s80 = sadd.s32 %s79, 1
    %s81 = scalar_select %p78, %s79, %s80
    %p84 = pneg %p78
    %p85 = scmp.eq.s32.totalorder %s8, 1
    %p86 = por %p84, %p85
    %p87 = scmp.ne.s32.totalorder %s79, %s82
    %p88 = scmp.eq.s32.totalorder %s8, 0
    %p89 = por %p87, %p88
    %p90 = scmp.ne.s32.totalorder %s79, %s82
    %p91 = scmp.eq.s32.totalorder %s13, 1
    %p92 = por %p90, %p91
    %p93 = scmp.ne.s32.totalorder %s82, %s83
    %p94 = scmp.eq.s32.totalorder %s13, 0
    %p95 = por %p93, %p94
    %p96 = scmp.ne.s32.totalorder %s82, %s83
    %p97 = scmp.eq.s32.totalorder %s14, 1
    %p98 = por %p96, %p97
    %p100 = scmp.ne.s32.totalorder %s83, %s99
    %p101 = scmp.eq.s32.totalorder %s14, 0
    %p102 = por %p100, %p101
    %p103 = scmp.le.s32.totalorder 1, %s8
    %p104 = scmp.lt.s32.totalorder %s8, 3
    %p105 = pnand %p103, %p104
    %p106 = pneg %p105
    // Predicated region
    $region9: #{gcn_model_forward.2} parent=5 // pred_check
      _
    $region10: #{gcn_model_forward.2} parent=5 // pred_check_branch
      %108 = sbr.rel (%p105) target = $region12
    $region11: #{gcn_model_forward.2} parent=5 // pred_region
      %s109 = ssub.s32 %s8, 1
      // Predicated region
      $region13: #{gcn_model_forward.2} parent=11 // pred_check
        %p110 = pneg %p69
      $region14: #{gcn_model_forward.2} parent=11 // pred_check_branch
        %112 = sbr.rel (%p110) target = $region16
      $region15: #{gcn_model_forward.2} parent=11 // pred_region
        _
      $region16: #{gcn_model_forward.2} parent=11 // pred_fallthru
        _
    $region12: #{gcn_model_forward.2} parent=5 // pred_fallthru
      _
    %p113 = scmp.lt.s32.totalorder %s8, 2
    // Predicated region
    $region17: #{gcn_model_forward.2} parent=5 // pred_check
      %p114 = pneg %p113
    $region18: #{gcn_model_forward.2} parent=5 // pred_check_branch
      %116 = sbr.rel (%p114) target = $region20
    $region19: #{gcn_model_forward.2} parent=5 // pred_region
      // Predicated region
      $region21: #{gcn_model_forward.2} parent=19 // pred_check
        %p117 = pneg %p42
      $region22: #{gcn_model_forward.2} parent=19 // pred_check_branch
        %119 = sbr.rel (%p117) target = $region24
      $region23: #{gcn_model_forward.2} parent=19 // pred_region
        %s120 = smul.u32 32, %s15
        %s121 = smul.u32 4, %s16
        %p122 = scmp.lt.s32.totalorder %s120, 63
        %s123 = scalar_select %p122, %s120, 63
        %p124 = scmp.lt.s32.totalorder %s121, 3
        %s125 = scalar_select %p124, %s121, 3
        %s126 = smul.addr %s123, 4
        %s127 = sadd.s32 %s125, %s126
        %s128 = smul.addr %s127, 4
        %s129 = scalar_lea.vmem %s0, %s128
        %s130 = smul.u32 32, %s15
        %s131 = smul.u32 4, %s16
      $region24: #{gcn_model_forward.2} parent=19 // pred_fallthru
        _
    $region20: #{gcn_model_forward.2} parent=5 // pred_fallthru
      _
    %p132 = scmp.le.s32.totalorder 1, %s8
    %p133 = scmp.lt.s32.totalorder %s8, 3
    %p134 = pnand %p132, %p133
    %p135 = pneg %p134
    // Predicated region
    $region25: #{gcn_model_forward.2} parent=5 // pred_check
      _
    $region26: #{gcn_model_forward.2} parent=5 // pred_check_branch
      %137 = sbr.rel (%p134) target = $region28
    $region27: #{gcn_model_forward.2} parent=5 // pred_region
      %s138 = ssub.s32 %s8, 1
      %s139 = smul.u32 32, %s17
      %s140 = smul.u32 4, %s18
      %p141 = scmp.lt.s32.totalorder %s139, 63
      %s142 = scalar_select %p141, %s139, 63
      %p143 = scmp.lt.s32.totalorder %s140, 3
      %s144 = scalar_select %p143, %s140, 3
      %s145 = smul.addr %s142, 4
      %s146 = sadd.s32 %s144, %s145
      %s147 = smul.addr %s146, 4
      %s148 = scalar_lea.vmem %s0, %s147
      %p149 = pneg %p48
      %p150 = pneg %p45
      %p151 = pneg %p69
      %p152 = pneg %p66
      %p153 = pneg %p95
      %p154 = pneg %p92
      %s155 = smul.u32 16, %s17
      %p156 = scmp.lt.s32.totalorder %s155, 31
      %s157 = scalar_select %p156, %s155, 31
      %s158 = smul.addr %s157, 8
      %s159 = scalar_lea.vmem %s2, %s158
      %s160 = smul.u32 32, %s17
      %s161 = smul.u32 4, %s18
      %p162 = scmp.lt.s32.totalorder %s160, 63
      %s163 = scalar_select %p162, %s160, 63
      %p164 = scmp.lt.s32.totalorder %s161, 3
      %s165 = scalar_select %p164, %s161, 3
      %s166 = smul.addr %s163, 4
      %s167 = sadd.s32 %s165, %s166
      %s168 = smul.addr %s167, 4
      %s169 = scalar_lea.vmem %s0, %s168
      %s170 = smul.u32 32, %s17
      %s171 = smul.u32 4, %s18
      %s172 = smul.u32 16, %s17
      %p173 = scmp.lt.s32.totalorder %s172, 31
      %s174 = scalar_select %p173, %s172, 31
      %s175 = smul.addr %s174, 8
      %s176 = scalar_lea.vmem %s2, %s175
      %s177 = smul.u32 16, %s17
      %p179 = scmp.eq.s32.totalorder %s18, 0
      // Predicated region
      $region29: #{gcn_model_forward.2} parent=27 // pred_check
        %p180 = pneg %p179
      $region30: #{gcn_model_forward.2} parent=27 // pred_check_branch
        %182 = sbr.rel (%p180) target = $region32
      $region31: #{gcn_model_forward.2} parent=27 // pred_region
        %183 = vst [vmem:[#allocation2] sm:$0xff] 0.0
        %184 = vst [vmem:[#allocation2 + $0x8] sm:$0xff] 0.0
        %185 = vst [vmem:[#allocation2 + $0x10] sm:$0xff] 0.0
        %186 = vst [vmem:[#allocation2 + $0x18] sm:$0xff] 0.0
        %187 = vst [vmem:[#allocation2 + $0x20] sm:$0xff] 0.0
        %188 = vst [vmem:[#allocation2 + $0x28] sm:$0xff] 0.0
        %189 = vst [vmem:[#allocation2 + $0x30] sm:$0xff] 0.0
        %190 = vst [vmem:[#allocation2 + $0x38] sm:$0xff] 0.0
        %191 = vst [vmem:[#allocation2 + $0x40] sm:$0xff] 0.0
        %192 = vst [vmem:[#allocation2 + $0x48] sm:$0xff] 0.0
        %193 = vst [vmem:[#allocation2 + $0x50] sm:$0xff] 0.0
        %194 = vst [vmem:[#allocation2 + $0x58] sm:$0xff] 0.0
        %195 = vst [vmem:[#allocation2 + $0x60] sm:$0xff] 0.0
        %196 = vst [vmem:[#allocation2 + $0x68] sm:$0xff] 0.0
        %197 = vst [vmem:[#allocation2 + $0x70] sm:$0xff] 0.0
        %198 = vst [vmem:[#allocation2 + $0x78] sm:$0xff] 0.0
        %199 = vst [vmem:[#allocation2 + $0x80] sm:$0xff] 0.0
        %200 = vst [vmem:[#allocation2 + $0x88] sm:$0xff] 0.0
        %201 = vst [vmem:[#allocation2 + $0x90] sm:$0xff] 0.0
        %202 = vst [vmem:[#allocation2 + $0x98] sm:$0xff] 0.0
        %203 = vst [vmem:[#allocation2 + $0xa0] sm:$0xff] 0.0
        %204 = vst [vmem:[#allocation2 + $0xa8] sm:$0xff] 0.0
        %205 = vst [vmem:[#allocation2 + $0xb0] sm:$0xff] 0.0
        %206 = vst [vmem:[#allocation2 + $0xb8] sm:$0xff] 0.0
        %207 = vst [vmem:[#allocation2 + $0xc0] sm:$0xff] 0.0
        %208 = vst [vmem:[#allocation2 + $0xc8] sm:$0xff] 0.0
        %209 = vst [vmem:[#allocation2 + $0xd0] sm:$0xff] 0.0
        %210 = vst [vmem:[#allocation2 + $0xd8] sm:$0xff] 0.0
        %211 = vst [vmem:[#allocation2 + $0xe0] sm:$0xff] 0.0
        %212 = vst [vmem:[#allocation2 + $0xe8] sm:$0xff] 0.0
        %213 = vst [vmem:[#allocation2 + $0xf0] sm:$0xff] 0.0
        %214 = vst [vmem:[#allocation2 + $0xf8] sm:$0xff] 0.0
      $region32: #{gcn_model_forward.2} parent=27 // pred_fallthru
        _
      %s215 = smul.u32 %s18, 512
      %v216 = vld [vmem:[#allocation2] sm:$0xff]
      %v217 = vld [vmem:[#allocation2 + $0x8] sm:$0xff]
      %v218 = vld [vmem:[#allocation2 + $0x10] sm:$0xff]
      %v219 = vld [vmem:[#allocation2 + $0x18] sm:$0xff]
      %v220 = vld [vmem:[#allocation2 + $0x20] sm:$0xff]
      %v221 = vld [vmem:[#allocation2 + $0x28] sm:$0xff]
      %v222 = vld [vmem:[#allocation2 + $0x30] sm:$0xff]
      %v223 = vld [vmem:[#allocation2 + $0x38] sm:$0xff]
      %v224 = vld [vmem:[#allocation2 + $0x40] sm:$0xff]
      %v225 = vld [vmem:[#allocation2 + $0x48] sm:$0xff]
      %v226 = vld [vmem:[#allocation2 + $0x50] sm:$0xff]
      %v227 = vld [vmem:[#allocation2 + $0x58] sm:$0xff]
      %v228 = vld [vmem:[#allocation2 + $0x60] sm:$0xff]
      %v229 = vld [vmem:[#allocation2 + $0x68] sm:$0xff]
      %v230 = vld [vmem:[#allocation2 + $0x70] sm:$0xff]
      %v231 = vld [vmem:[#allocation2 + $0x78] sm:$0xff]
      %v232 = vld [vmem:[#allocation2 + $0x80] sm:$0xff]
      %v233 = vld [vmem:[#allocation2 + $0x88] sm:$0xff]
      %v234 = vld [vmem:[#allocation2 + $0x90] sm:$0xff]
      %v235 = vld [vmem:[#allocation2 + $0x98] sm:$0xff]
      %v236 = vld [vmem:[#allocation2 + $0xa0] sm:$0xff]
      %v237 = vld [vmem:[#allocation2 + $0xa8] sm:$0xff]
      %v238 = vld [vmem:[#allocation2 + $0xb0] sm:$0xff]
      %v239 = vld [vmem:[#allocation2 + $0xb8] sm:$0xff]
      %v240 = vld [vmem:[#allocation2 + $0xc0] sm:$0xff]
      %v241 = vld [vmem:[#allocation2 + $0xc8] sm:$0xff]
      %v242 = vld [vmem:[#allocation2 + $0xd0] sm:$0xff]
      %v243 = vld [vmem:[#allocation2 + $0xd8] sm:$0xff]
      %v244 = vld [vmem:[#allocation2 + $0xe0] sm:$0xff]
      %v245 = vld [vmem:[#allocation2 + $0xe8] sm:$0xff]
      %v246 = vld [vmem:[#allocation2 + $0xf0] sm:$0xff]
      %v247 = vld [vmem:[#allocation2 + $0xf8] sm:$0xff]
      %v248 = vld [vmem:[%s169] sm:$0xff]
      %v249 = vld [vmem:[%s169 + $0x8] sm:$0xff]
      %v250 = vld [vmem:[%s169 + $0x10] sm:$0xff]
      %v251 = vld [vmem:[%s169 + $0x18] sm:$0xff]
      %v252 = vld [vmem:[%s169 + $0x20] sm:$0xff]
      %v253 = vld [vmem:[%s169 + $0x28] sm:$0xff]
      %v254 = vld [vmem:[%s169 + $0x30] sm:$0xff]
      %v255 = vld [vmem:[%s169 + $0x38] sm:$0xff]
      %v256 = vld [vmem:[%s169 + $0x40] sm:$0xff]
      %v257 = vld [vmem:[%s169 + $0x48] sm:$0xff]
      %v258 = vld [vmem:[%s169 + $0x50] sm:$0xff]
      %v259 = vld [vmem:[%s169 + $0x58] sm:$0xff]
      %v260 = vld [vmem:[%s169 + $0x60] sm:$0xff]
      %v261 = vld [vmem:[%s169 + $0x68] sm:$0xff]
      %v262 = vld [vmem:[%s169 + $0x70] sm:$0xff]
      %v263 = vld [vmem:[%s169 + $0x78] sm:$0xff]
      %v264 = vld [vmem:[%s169 + $0x80] sm:$0xff]
      %v265 = vld [vmem:[%s169 + $0x88] sm:$0xff]
      %v266 = vld [vmem:[%s169 + $0x90] sm:$0xff]
      %v267 = vld [vmem:[%s169 + $0x98] sm:$0xff]
      %v268 = vld [vmem:[%s169 + $0xa0] sm:$0xff]
      %v269 = vld [vmem:[%s169 + $0xa8] sm:$0xff]
      %v270 = vld [vmem:[%s169 + $0xb0] sm:$0xff]
      %v271 = vld [vmem:[%s169 + $0xb8] sm:$0xff]
      %v272 = vld [vmem:[%s169 + $0xc0] sm:$0xff]
      %v273 = vld [vmem:[%s169 + $0xc8] sm:$0xff]
      %v274 = vld [vmem:[%s169 + $0xd0] sm:$0xff]
      %v275 = vld [vmem:[%s169 + $0xd8] sm:$0xff]
      %v276 = vld [vmem:[%s169 + $0xe0] sm:$0xff]
      %v277 = vld [vmem:[%s169 + $0xe8] sm:$0xff]
      %v278 = vld [vmem:[%s169 + $0xf0] sm:$0xff]
      %v279 = vld [vmem:[%s169 + $0xf8] sm:$0xff]
      %v280 = vld [vmem:[%s169 + $0x100] sm:$0xff]
      %v281 = vld [vmem:[%s169 + $0x108] sm:$0xff]
      %v282 = vld [vmem:[%s169 + $0x110] sm:$0xff]
      %v283 = vld [vmem:[%s169 + $0x118] sm:$0xff]
      %v284 = vld [vmem:[%s169 + $0x120] sm:$0xff]
      %v285 = vld [vmem:[%s169 + $0x128] sm:$0xff]
      %v286 = vld [vmem:[%s169 + $0x130] sm:$0xff]
      %v287 = vld [vmem:[%s169 + $0x138] sm:$0xff]
      %v288 = vld [vmem:[%s169 + $0x140] sm:$0xff]
      %v289 = vld [vmem:[%s169 + $0x148] sm:$0xff]
      %v290 = vld [vmem:[%s169 + $0x150] sm:$0xff]
      %v291 = vld [vmem:[%s169 + $0x158] sm:$0xff]
      %v292 = vld [vmem:[%s169 + $0x160] sm:$0xff]
      %v293 = vld [vmem:[%s169 + $0x168] sm:$0xff]
      %v294 = vld [vmem:[%s169 + $0x170] sm:$0xff]
      %v295 = vld [vmem:[%s169 + $0x178] sm:$0xff]
      %v296 = vld [vmem:[%s169 + $0x180] sm:$0xff]
      %v297 = vld [vmem:[%s169 + $0x188] sm:$0xff]
      %v298 = vld [vmem:[%s169 + $0x190] sm:$0xff]
      %v299 = vld [vmem:[%s169 + $0x198] sm:$0xff]
      %v300 = vld [vmem:[%s169 + $0x1a0] sm:$0xff]
      %v301 = vld [vmem:[%s169 + $0x1a8] sm:$0xff]
      %v302 = vld [vmem:[%s169 + $0x1b0] sm:$0xff]
      %v303 = vld [vmem:[%s169 + $0x1b8] sm:$0xff]
      %v304 = vld [vmem:[%s169 + $0x1c0] sm:$0xff]
      %v305 = vld [vmem:[%s169 + $0x1c8] sm:$0xff]
      %v306 = vld [vmem:[%s169 + $0x1d0] sm:$0xff]
      %v307 = vld [vmem:[%s169 + $0x1d8] sm:$0xff]
      %v308 = vld [vmem:[%s169 + $0x1e0] sm:$0xff]
      %v309 = vld [vmem:[%s169 + $0x1e8] sm:$0xff]
      %v310 = vld [vmem:[%s169 + $0x1f0] sm:$0xff]
      %v311 = vld [vmem:[%s169 + $0x1f8] sm:$0xff]
      %s312 = sshra.s32 %s215, 3
      %s313 = sand.u32 %s215, 7
      %s314 = smul.addr %s312, 4
      %s315 = scalar_lea.vmem %s1, %s314
      %v316 = vld [vmem:[%s315] sm:$0xf]
      %v317 = vld [vmem:[%s315 + $0x4] sm:$0xf]
      %v318 = vld [vmem:[%s315 + $0x8] sm:$0xf]
      %v319 = vld [vmem:[%s315 + $0xc] sm:$0xf]
      %v320 = vld [vmem:[%s315 + $0x10] sm:$0xf]
      %v321 = vld [vmem:[%s315 + $0x14] sm:$0xf]
      %v322 = vld [vmem:[%s315 + $0x18] sm:$0xf]
      %v323 = vld [vmem:[%s315 + $0x1c] sm:$0xf]
      %v324 = vld [vmem:[%s315 + $0x20] sm:$0xf]
      %v325 = vld [vmem:[%s315 + $0x24] sm:$0xf]
      %v326 = vld [vmem:[%s315 + $0x28] sm:$0xf]
      %v327 = vld [vmem:[%s315 + $0x2c] sm:$0xf]
      %v328 = vld [vmem:[%s315 + $0x30] sm:$0xf]
      %v329 = vld [vmem:[%s315 + $0x34] sm:$0xf]
      %v330 = vld [vmem:[%s315 + $0x38] sm:$0xf]
      %v331 = vld [vmem:[%s315 + $0x3c] sm:$0xf]
      %v332 = vld [vmem:[%s315 + $0x40] sm:$0xf]
      %v333 = vld [vmem:[%s315 + $0x44] sm:$0xf]
      %v334 = vld [vmem:[%s315 + $0x48] sm:$0xf]
      %v335 = vld [vmem:[%s315 + $0x4c] sm:$0xf]
      %v336 = vld [vmem:[%s315 + $0x50] sm:$0xf]
      %v337 = vld [vmem:[%s315 + $0x54] sm:$0xf]
      %v338 = vld [vmem:[%s315 + $0x58] sm:$0xf]
      %v339 = vld [vmem:[%s315 + $0x5c] sm:$0xf]
      %v340 = vld [vmem:[%s315 + $0x60] sm:$0xf]
      %v341 = vld [vmem:[%s315 + $0x64] sm:$0xf]
      %v342 = vld [vmem:[%s315 + $0x68] sm:$0xf]
      %v343 = vld [vmem:[%s315 + $0x6c] sm:$0xf]
      %v344 = vld [vmem:[%s315 + $0x70] sm:$0xf]
      %v345 = vld [vmem:[%s315 + $0x74] sm:$0xf]
      %v346 = vld [vmem:[%s315 + $0x78] sm:$0xf]
      %v347 = vld [vmem:[%s315 + $0x7c] sm:$0xf]
      %v348 = vld [vmem:[%s315 + $0x80] sm:$0xf]
      %v349 = vld [vmem:[%s315 + $0x84] sm:$0xf]
      %v350 = vld [vmem:[%s315 + $0x88] sm:$0xf]
      %v351 = vld [vmem:[%s315 + $0x8c] sm:$0xf]
      %v352 = vld [vmem:[%s315 + $0x90] sm:$0xf]
      %v353 = vld [vmem:[%s315 + $0x94] sm:$0xf]
      %v354 = vld [vmem:[%s315 + $0x98] sm:$0xf]
      %v355 = vld [vmem:[%s315 + $0x9c] sm:$0xf]
      %v356 = vld [vmem:[%s315 + $0xa0] sm:$0xf]
      %v357 = vld [vmem:[%s315 + $0xa4] sm:$0xf]
      %v358 = vld [vmem:[%s315 + $0xa8] sm:$0xf]
      %v359 = vld [vmem:[%s315 + $0xac] sm:$0xf]
      %v360 = vld [vmem:[%s315 + $0xb0] sm:$0xf]
      %v361 = vld [vmem:[%s315 + $0xb4] sm:$0xf]
      %v362 = vld [vmem:[%s315 + $0xb8] sm:$0xf]
      %v363 = vld [vmem:[%s315 + $0xbc] sm:$0xf]
      %v364 = vld [vmem:[%s315 + $0xc0] sm:$0xf]
      %v365 = vld [vmem:[%s315 + $0xc4] sm:$0xf]
      %v366 = vld [vmem:[%s315 + $0xc8] sm:$0xf]
      %v367 = vld [vmem:[%s315 + $0xcc] sm:$0xf]
      %v368 = vld [vmem:[%s315 + $0xd0] sm:$0xf]
      %v369 = vld [vmem:[%s315 + $0xd4] sm:$0xf]
      %v370 = vld [vmem:[%s315 + $0xd8] sm:$0xf]
      %v371 = vld [vmem:[%s315 + $0xdc] sm:$0xf]
      %v372 = vld [vmem:[%s315 + $0xe0] sm:$0xf]
      %v373 = vld [vmem:[%s315 + $0xe4] sm:$0xf]
      %v374 = vld [vmem:[%s315 + $0xe8] sm:$0xf]
      %v375 = vld [vmem:[%s315 + $0xec] sm:$0xf]
      %v376 = vld [vmem:[%s315 + $0xf0] sm:$0xf]
      %v377 = vld [vmem:[%s315 + $0xf4] sm:$0xf]
      %v378 = vld [vmem:[%s315 + $0xf8] sm:$0xf]
      %v379 = vld [vmem:[%s315 + $0xfc] sm:$0xf]
      %v444 = vunpack.c.l.b16 %v248
      %v445 = vunpack.c.h.b16 %v248
      %v446 = vunpack.c.l.b16 %v249
      %v447 = vunpack.c.h.b16 %v249
      %v448 = vunpack.c.l.b16 %v250
      %v449 = vunpack.c.h.b16 %v250
      %v450 = vunpack.c.l.b16 %v251
      %v451 = vunpack.c.h.b16 %v251
      %v452 = vunpack.c.l.b16 %v252
      %v453 = vunpack.c.h.b16 %v252
      %v454 = vunpack.c.l.b16 %v253
      %v455 = vunpack.c.h.b16 %v253
      %v456 = vunpack.c.l.b16 %v254
      %v457 = vunpack.c.h.b16 %v254
      %v458 = vunpack.c.l.b16 %v255
      %v459 = vunpack.c.h.b16 %v255
      %v460 = vunpack.c.l.b16 %v256
      %v461 = vunpack.c.h.b16 %v256
      %v462 = vunpack.c.l.b16 %v257
      %v463 = vunpack.c.h.b16 %v257
      %v464 = vunpack.c.l.b16 %v258
      %v465 = vunpack.c.h.b16 %v258
      %v466 = vunpack.c.l.b16 %v259
      %v467 = vunpack.c.h.b16 %v259
      %v468 = vunpack.c.l.b16 %v260
      %v469 = vunpack.c.h.b16 %v260
      %v470 = vunpack.c.l.b16 %v261
      %v471 = vunpack.c.h.b16 %v261
      %v472 = vunpack.c.l.b16 %v262
      %v473 = vunpack.c.h.b16 %v262
      %v474 = vunpack.c.l.b16 %v263
      %v475 = vunpack.c.h.b16 %v263
      %v476 = vunpack.c.l.b16 %v264
      %v477 = vunpack.c.h.b16 %v264
      %v478 = vunpack.c.l.b16 %v265
      %v479 = vunpack.c.h.b16 %v265
      %v480 = vunpack.c.l.b16 %v266
      %v481 = vunpack.c.h.b16 %v266
      %v482 = vunpack.c.l.b16 %v267
      %v483 = vunpack.c.h.b16 %v267
      %v484 = vunpack.c.l.b16 %v268
      %v485 = vunpack.c.h.b16 %v268
      %v486 = vunpack.c.l.b16 %v269
      %v487 = vunpack.c.h.b16 %v269
      %v488 = vunpack.c.l.b16 %v270
      %v489 = vunpack.c.h.b16 %v270
      %v490 = vunpack.c.l.b16 %v271
      %v491 = vunpack.c.h.b16 %v271
      %v492 = vunpack.c.l.b16 %v272
      %v493 = vunpack.c.h.b16 %v272
      %v494 = vunpack.c.l.b16 %v273
      %v495 = vunpack.c.h.b16 %v273
      %v496 = vunpack.c.l.b16 %v274
      %v497 = vunpack.c.h.b16 %v274
      %v498 = vunpack.c.l.b16 %v275
      %v499 = vunpack.c.h.b16 %v275
      %v500 = vunpack.c.l.b16 %v276
      %v501 = vunpack.c.h.b16 %v276
      %v502 = vunpack.c.l.b16 %v277
      %v503 = vunpack.c.h.b16 %v277
      %v504 = vunpack.c.l.b16 %v278
      %v505 = vunpack.c.h.b16 %v278
      %v506 = vunpack.c.l.b16 %v279
      %v507 = vunpack.c.h.b16 %v279
      %v508 = vunpack.c.l.b16 %v280
      %v509 = vunpack.c.h.b16 %v280
      %v510 = vunpack.c.l.b16 %v281
      %v511 = vunpack.c.h.b16 %v281
      %v512 = vunpack.c.l.b16 %v282
      %v513 = vunpack.c.h.b16 %v282
      %v514 = vunpack.c.l.b16 %v283
      %v515 = vunpack.c.h.b16 %v283
      %v516 = vunpack.c.l.b16 %v284
      %v517 = vunpack.c.h.b16 %v284
      %v518 = vunpack.c.l.b16 %v285
      %v519 = vunpack.c.h.b16 %v285
      %v520 = vunpack.c.l.b16 %v286
      %v521 = vunpack.c.h.b16 %v286
      %v522 = vunpack.c.l.b16 %v287
      %v523 = vunpack.c.h.b16 %v287
      %v524 = vunpack.c.l.b16 %v288
      %v525 = vunpack.c.h.b16 %v288
      %v526 = vunpack.c.l.b16 %v289
      %v527 = vunpack.c.h.b16 %v289
      %v528 = vunpack.c.l.b16 %v290
      %v529 = vunpack.c.h.b16 %v290
      %v530 = vunpack.c.l.b16 %v291
      %v531 = vunpack.c.h.b16 %v291
      %v532 = vunpack.c.l.b16 %v292
      %v533 = vunpack.c.h.b16 %v292
      %v534 = vunpack.c.l.b16 %v293
      %v535 = vunpack.c.h.b16 %v293
      %v536 = vunpack.c.l.b16 %v294
      %v537 = vunpack.c.h.b16 %v294
      %v538 = vunpack.c.l.b16 %v295
      %v539 = vunpack.c.h.b16 %v295
      %v540 = vunpack.c.l.b16 %v296
      %v541 = vunpack.c.h.b16 %v296
      %v542 = vunpack.c.l.b16 %v297
      %v543 = vunpack.c.h.b16 %v297
      %v544 = vunpack.c.l.b16 %v298
      %v545 = vunpack.c.h.b16 %v298
      %v546 = vunpack.c.l.b16 %v299
      %v547 = vunpack.c.h.b16 %v299
      %v548 = vunpack.c.l.b16 %v300
      %v549 = vunpack.c.h.b16 %v300
      %v550 = vunpack.c.l.b16 %v301
      %v551 = vunpack.c.h.b16 %v301
      %v552 = vunpack.c.l.b16 %v302
      %v553 = vunpack.c.h.b16 %v302
      %v554 = vunpack.c.l.b16 %v303
      %v555 = vunpack.c.h.b16 %v303
      %v556 = vunpack.c.l.b16 %v304
      %v557 = vunpack.c.h.b16 %v304
      %v558 = vunpack.c.l.b16 %v305
      %v559 = vunpack.c.h.b16 %v305
      %v560 = vunpack.c.l.b16 %v306
      %v561 = vunpack.c.h.b16 %v306
      %v562 = vunpack.c.l.b16 %v307
      %v563 = vunpack.c.h.b16 %v307
      %v564 = vunpack.c.l.b16 %v308
      %v565 = vunpack.c.h.b16 %v308
      %v566 = vunpack.c.l.b16 %v309
      %v567 = vunpack.c.h.b16 %v309
      %v568 = vunpack.c.l.b16 %v310
      %v569 = vunpack.c.h.b16 %v310
      %v570 = vunpack.c.l.b16 %v311
      %v571 = vunpack.c.h.b16 %v311
      %v572 = vpack.c.b16 %v448, %v444
      %v573 = vpack.c.b16 %v449, %v445
      %v574 = vpack.c.b16 %v450, %v446
      %v575 = vpack.c.b16 %v451, %v447
      %v576 = vpack.c.b16 %v456, %v452
      %v577 = vpack.c.b16 %v457, %v453
      %v578 = vpack.c.b16 %v458, %v454
      %v579 = vpack.c.b16 %v459, %v455
      %v580 = vpack.c.b16 %v464, %v460
      %v581 = vpack.c.b16 %v465, %v461
      %v582 = vpack.c.b16 %v466, %v462
      %v583 = vpack.c.b16 %v467, %v463
      %v584 = vpack.c.b16 %v472, %v468
      %v585 = vpack.c.b16 %v473, %v469
      %v586 = vpack.c.b16 %v474, %v470
      %v587 = vpack.c.b16 %v475, %v471
      %v588 = vpack.c.b16 %v480, %v476
      %v589 = vpack.c.b16 %v481, %v477
      %v590 = vpack.c.b16 %v482, %v478
      %v591 = vpack.c.b16 %v483, %v479
      %v592 = vpack.c.b16 %v488, %v484
      %v593 = vpack.c.b16 %v489, %v485
      %v594 = vpack.c.b16 %v490, %v486
      %v595 = vpack.c.b16 %v491, %v487
      %v596 = vpack.c.b16 %v496, %v492
      %v597 = vpack.c.b16 %v497, %v493
      %v598 = vpack.c.b16 %v498, %v494
      %v599 = vpack.c.b16 %v499, %v495
      %v600 = vpack.c.b16 %v504, %v500
      %v601 = vpack.c.b16 %v505, %v501
      %v602 = vpack.c.b16 %v506, %v502
      %v603 = vpack.c.b16 %v507, %v503
      %v604 = vpack.c.b16 %v512, %v508
      %v605 = vpack.c.b16 %v513, %v509
      %v606 = vpack.c.b16 %v514, %v510
      %v607 = vpack.c.b16 %v515, %v511
      %v608 = vpack.c.b16 %v520, %v516
      %v609 = vpack.c.b16 %v521, %v517
      %v610 = vpack.c.b16 %v522, %v518
      %v611 = vpack.c.b16 %v523, %v519
      %v612 = vpack.c.b16 %v528, %v524
      %v613 = vpack.c.b16 %v529, %v525
      %v614 = vpack.c.b16 %v530, %v526
      %v615 = vpack.c.b16 %v531, %v527
      %v616 = vpack.c.b16 %v536, %v532
      %v617 = vpack.c.b16 %v537, %v533
      %v618 = vpack.c.b16 %v538, %v534
      %v619 = vpack.c.b16 %v539, %v535
      %v620 = vpack.c.b16 %v544, %v540
      %v621 = vpack.c.b16 %v545, %v541
      %v622 = vpack.c.b16 %v546, %v542
      %v623 = vpack.c.b16 %v547, %v543
      %v624 = vpack.c.b16 %v552, %v548
      %v625 = vpack.c.b16 %v553, %v549
      %v626 = vpack.c.b16 %v554, %v550
      %v627 = vpack.c.b16 %v555, %v551
      %v628 = vpack.c.b16 %v560, %v556
      %v629 = vpack.c.b16 %v561, %v557
      %v630 = vpack.c.b16 %v562, %v558
      %v631 = vpack.c.b16 %v563, %v559
      %v632 = vpack.c.b16 %v568, %v564
      %v633 = vpack.c.b16 %v569, %v565
      %v634 = vpack.c.b16 %v570, %v566
      %v635 = vpack.c.b16 %v571, %v567
      %v764 = vunpack.c.l.b16 %v316
      %v765 = vunpack.c.l.b16 %v317
      %v766 = vunpack.c.l.b16 %v318
      %v767 = vunpack.c.l.b16 %v319
      %v768 = vunpack.c.l.b16 %v320
      %v769 = vunpack.c.l.b16 %v321
      %v770 = vunpack.c.l.b16 %v322
      %v771 = vunpack.c.l.b16 %v323
      %v772 = vunpack.c.l.b16 %v324
      %v773 = vunpack.c.l.b16 %v325
      %v774 = vunpack.c.l.b16 %v326
      %v775 = vunpack.c.l.b16 %v327
      %v776 = vunpack.c.l.b16 %v328
      %v777 = vunpack.c.l.b16 %v329
      %v778 = vunpack.c.l.b16 %v330
      %v779 = vunpack.c.l.b16 %v331
      %v780 = vunpack.c.l.b16 %v332
      %v781 = vunpack.c.l.b16 %v333
      %v782 = vunpack.c.l.b16 %v334
      %v783 = vunpack.c.l.b16 %v335
      %v784 = vunpack.c.l.b16 %v336
      %v785 = vunpack.c.l.b16 %v337
      %v786 = vunpack.c.l.b16 %v338
      %v787 = vunpack.c.l.b16 %v339
      %v788 = vunpack.c.l.b16 %v340
      %v789 = vunpack.c.l.b16 %v341
      %v790 = vunpack.c.l.b16 %v342
      %v791 = vunpack.c.l.b16 %v343
      %v792 = vunpack.c.l.b16 %v344
      %v793 = vunpack.c.l.b16 %v345
      %v794 = vunpack.c.l.b16 %v346
      %v795 = vunpack.c.l.b16 %v347
      %v796 = vunpack.c.l.b16 %v348
      %v797 = vunpack.c.l.b16 %v349
      %v798 = vunpack.c.l.b16 %v350
      %v799 = vunpack.c.l.b16 %v351
      %v800 = vunpack.c.l.b16 %v352
      %v801 = vunpack.c.l.b16 %v353
      %v802 = vunpack.c.l.b16 %v354
      %v803 = vunpack.c.l.b16 %v355
      %v804 = vunpack.c.l.b16 %v356
      %v805 = vunpack.c.l.b16 %v357
      %v806 = vunpack.c.l.b16 %v358
      %v807 = vunpack.c.l.b16 %v359
      %v808 = vunpack.c.l.b16 %v360
      %v809 = vunpack.c.l.b16 %v361
      %v810 = vunpack.c.l.b16 %v362
      %v811 = vunpack.c.l.b16 %v363
      %v812 = vunpack.c.l.b16 %v364
      %v813 = vunpack.c.l.b16 %v365
      %v814 = vunpack.c.l.b16 %v366
      %v815 = vunpack.c.l.b16 %v367
      %v816 = vunpack.c.l.b16 %v368
      %v817 = vunpack.c.l.b16 %v369
      %v818 = vunpack.c.l.b16 %v370
      %v819 = vunpack.c.l.b16 %v371
      %v820 = vunpack.c.l.b16 %v372
      %v821 = vunpack.c.l.b16 %v373
      %v822 = vunpack.c.l.b16 %v374
      %v823 = vunpack.c.l.b16 %v375
      %v824 = vunpack.c.l.b16 %v376
      %v825 = vunpack.c.l.b16 %v377
      %v826 = vunpack.c.l.b16 %v378
      %v827 = vunpack.c.l.b16 %v379
      %v828 = vpack.c.b16 %v765, %v764
      %v829 = vpack.c.b16 %v767, %v766
      %v830 = vpack.c.b16 %v769, %v768
      %v831 = vpack.c.b16 %v771, %v770
      %v832 = vpack.c.b16 %v773, %v772
      %v833 = vpack.c.b16 %v775, %v774
      %v834 = vpack.c.b16 %v777, %v776
      %v835 = vpack.c.b16 %v779, %v778
      %v836 = vpack.c.b16 %v781, %v780
      %v837 = vpack.c.b16 %v783, %v782
      %v838 = vpack.c.b16 %v785, %v784
      %v839 = vpack.c.b16 %v787, %v786
      %v840 = vpack.c.b16 %v789, %v788
      %v841 = vpack.c.b16 %v791, %v790
      %v842 = vpack.c.b16 %v793, %v792
      %v843 = vpack.c.b16 %v795, %v794
      %v844 = vpack.c.b16 %v797, %v796
      %v845 = vpack.c.b16 %v799, %v798
      %v846 = vpack.c.b16 %v801, %v800
      %v847 = vpack.c.b16 %v803, %v802
      %v848 = vpack.c.b16 %v805, %v804
      %v849 = vpack.c.b16 %v807, %v806
      %v850 = vpack.c.b16 %v809, %v808
      %v851 = vpack.c.b16 %v811, %v810
      %v852 = vpack.c.b16 %v813, %v812
      %v853 = vpack.c.b16 %v815, %v814
      %v854 = vpack.c.b16 %v817, %v816
      %v855 = vpack.c.b16 %v819, %v818
      %v856 = vpack.c.b16 %v821, %v820
      %v857 = vpack.c.b16 %v823, %v822
      %v858 = vpack.c.b16 %v825, %v824
      %v859 = vpack.c.b16 %v827, %v826
      %892 = vmatprep.subr.bf16.mxu0 0
      %893 = vmatpush1.bf16.msra.mxu0 %v828
      %894 = vmatprep.subr.bf16.mxu0 0
      %895 = vmatpush1.bf16.msra.mxu0 %v829
      %896 = vmatprep.subr.bf16.mxu0 0
      %897 = vmatpush1.bf16.msra.mxu0 %v830
      %898 = vmatprep.subr.bf16.mxu0 0
      %899 = vmatpush1.bf16.msra.mxu0 %v831
      %900 = vmatprep.subr.bf16.mxu0 0
      %901 = vmatpush1.bf16.msra.mxu0 %v832
      %902 = vmatprep.subr.bf16.mxu0 0
      %903 = vmatpush1.bf16.msra.mxu0 %v833
      %904 = vmatprep.subr.bf16.mxu0 0
      %905 = vmatpush1.bf16.msra.mxu0 %v834
      %906 = vmatprep.subr.bf16.mxu0 0
      %907 = vmatpush1.bf16.msra.mxu0 %v835
      %908 = vmatprep.subr.bf16.mxu0 0
      %909 = vmatpush1.bf16.msra.mxu0 %v836
      %910 = vmatprep.subr.bf16.mxu0 0
      %911 = vmatpush1.bf16.msra.mxu0 %v837
      %912 = vmatprep.subr.bf16.mxu0 0
      %913 = vmatpush1.bf16.msra.mxu0 %v838
      %914 = vmatprep.subr.bf16.mxu0 0
      %915 = vmatpush1.bf16.msra.mxu0 %v839
      %916 = vmatprep.subr.bf16.mxu0 0
      %917 = vmatpush1.bf16.msra.mxu0 %v840
      %918 = vmatprep.subr.bf16.mxu0 0
      %919 = vmatpush1.bf16.msra.mxu0 %v841
      %920 = vmatprep.subr.bf16.mxu0 0
      %921 = vmatpush1.bf16.msra.mxu0 %v842
      %922 = vmatprep.subr.bf16.mxu0 0
      %923 = vmatpush1.bf16.msra.mxu0 %v843
      %924 = vmatprep.mubr.bf16.mxu0 %v573
      %925 = vmatmul.mubr.bf16.gmra.mrb[0].mxu0 %v572
      %v926 = vpop.f32.mrb[0].mxu0
      %v927 = vadd.f32 0.0, %v926
      %v928 = vpop.f32.mrb[0].mxu0
      %v929 = vpop.f32.mrb[0].mxu0
      %v930 = vadd.f32 0.0, %v929
      %v931 = vpop.f32.mrb[0].mxu0
      %932 = vmatprep.mubr.bf16.mxu0 %v577
      %933 = vmatmul.mubr.bf16.gmra.mrb[0].mxu0 %v576
      %v934 = vpop.f32.mrb[0].mxu0
      %v935 = vadd.f32 0.0, %v934
      %v936 = vpop.f32.mrb[0].mxu0
      %v937 = vpop.f32.mrb[0].mxu0
      %v938 = vadd.f32 0.0, %v937
      %v939 = vpop.f32.mrb[0].mxu0
      %940 = vmatprep.mubr.bf16.mxu0 %v581
      %941 = vmatmul.mubr.bf16.gmra.mrb[0].mxu0 %v580
      %v942 = vpop.f32.mrb[0].mxu0
      %v943 = vadd.f32 0.0, %v942
      %v944 = vpop.f32.mrb[0].mxu0
      %v945 = vpop.f32.mrb[0].mxu0
      %v946 = vadd.f32 0.0, %v945
      %v947 = vpop.f32.mrb[0].mxu0
      %948 = vmatprep.mubr.bf16.mxu0 %v585
      %949 = vmatmul.mubr.bf16.gmra.mrb[0].mxu0 %v584
      %v950 = vpop.f32.mrb[0].mxu0
      %v951 = vadd.f32 0.0, %v950
      %v952 = vpop.f32.mrb[0].mxu0
      %v953 = vpop.f32.mrb[0].mxu0
      %v954 = vadd.f32 0.0, %v953
      %v955 = vpop.f32.mrb[0].mxu0
      %956 = vmatprep.mubr.bf16.mxu0 %v589
      %957 = vmatmul.mubr.bf16.gmra.mrb[0].mxu0 %v588
      %v958 = vpop.f32.mrb[0].mxu0
      %v959 = vadd.f32 0.0, %v958
      %v960 = vpop.f32.mrb[0].mxu0
      %v961 = vpop.f32.mrb[0].mxu0
      %v962 = vadd.f32 0.0, %v961
      %v963 = vpop.f32.mrb[0].mxu0
      %964 = vmatprep.mubr.bf16.mxu0 %v593
      %965 = vmatmul.mubr.bf16.gmra.mrb[0].mxu0 %v592
      %v966 = vpop.f32.mrb[0].mxu0
      %v967 = vadd.f32 0.0, %v966
      %v968 = vpop.f32.mrb[0].mxu0
      %v969 = vpop.f32.mrb[0].mxu0
      %v970 = vadd.f32 0.0, %v969
      %v971 = vpop.f32.mrb[0].mxu0
      %972 = vmatprep.mubr.bf16.mxu0 %v597
      %973 = vmatmul.mubr.bf16.gmra.mrb[0].mxu0 %v596
      %v974 = vpop.f32.mrb[0].mxu0
      %v975 = vadd.f32 0.0, %v974
      %v976 = vpop.f32.mrb[0].mxu0
      %v977 = vpop.f32.mrb[0].mxu0
      %v978 = vadd.f32 0.0, %v977
      %v979 = vpop.f32.mrb[0].mxu0
      %980 = vmatprep.mubr.bf16.mxu0 %v601
      %981 = vmatmul.mubr.bf16.gmra.mrb[0].mxu0 %v600
      %v982 = vpop.f32.mrb[0].mxu0
      %v983 = vadd.f32 0.0, %v982
      %v984 = vpop.f32.mrb[0].mxu0
      %v985 = vpop.f32.mrb[0].mxu0
      %v986 = vadd.f32 0.0, %v985
      %v987 = vpop.f32.mrb[0].mxu0
      %988 = vmatprep.mubr.bf16.mxu0 %v605
      %989 = vmatmul.mubr.bf16.gmra.mrb[0].mxu0 %v604
      %v990 = vpop.f32.mrb[0].mxu0
      %v991 = vadd.f32 0.0, %v990
      %v992 = vpop.f32.mrb[0].mxu0
      %v993 = vpop.f32.mrb[0].mxu0
      %v994 = vadd.f32 0.0, %v993
      %v995 = vpop.f32.mrb[0].mxu0
      %996 = vmatprep.mubr.bf16.mxu0 %v609
      %997 = vmatmul.mubr.bf16.gmra.mrb[0].mxu0 %v608
      %v998 = vpop.f32.mrb[0].mxu0
      %v999 = vadd.f32 0.0, %v998
      %v1000 = vpop.f32.mrb[0].mxu0
      %v1001 = vpop.f32.mrb[0].mxu0
      %v1002 = vadd.f32 0.0, %v1001
      %v1003 = vpop.f32.mrb[0].mxu0
      %1004 = vmatprep.mubr.bf16.mxu0 %v613
      %1005 = vmatmul.mubr.bf16.gmra.mrb[0].mxu0 %v612
      %v1006 = vpop.f32.mrb[0].mxu0
      %v1007 = vadd.f32 0.0, %v1006
      %v1008 = vpop.f32.mrb[0].mxu0
      %v1009 = vpop.f32.mrb[0].mxu0
      %v1010 = vadd.f32 0.0, %v1009
      %v1011 = vpop.f32.mrb[0].mxu0
      %1012 = vmatprep.mubr.bf16.mxu0 %v617
      %1013 = vmatmul.mubr.bf16.gmra.mrb[0].mxu0 %v616
      %v1014 = vpop.f32.mrb[0].mxu0
      %v1015 = vadd.f32 0.0, %v1014
      %v1016 = vpop.f32.mrb[0].mxu0
      %v1017 = vpop.f32.mrb[0].mxu0
      %v1018 = vadd.f32 0.0, %v1017
      %v1019 = vpop.f32.mrb[0].mxu0
      %1020 = vmatprep.mubr.bf16.mxu0 %v621
      %1021 = vmatmul.mubr.bf16.gmra.mrb[0].mxu0 %v620
      %v1022 = vpop.f32.mrb[0].mxu0
      %v1023 = vadd.f32 0.0, %v1022
      %v1024 = vpop.f32.mrb[0].mxu0
      %v1025 = vpop.f32.mrb[0].mxu0
      %v1026 = vadd.f32 0.0, %v1025
      %v1027 = vpop.f32.mrb[0].mxu0
      %1028 = vmatprep.mubr.bf16.mxu0 %v625
      %1029 = vmatmul.mubr.bf16.gmra.mrb[0].mxu0 %v624
      %v1030 = vpop.f32.mrb[0].mxu0
      %v1031 = vadd.f32 0.0, %v1030
      %v1032 = vpop.f32.mrb[0].mxu0
      %v1033 = vpop.f32.mrb[0].mxu0
      %v1034 = vadd.f32 0.0, %v1033
      %v1035 = vpop.f32.mrb[0].mxu0
      %1036 = vmatprep.mubr.bf16.mxu0 %v629
      %1037 = vmatmul.mubr.bf16.gmra.mrb[0].mxu0 %v628
      %v1038 = vpop.f32.mrb[0].mxu0
      %v1039 = vadd.f32 0.0, %v1038
      %v1040 = vpop.f32.mrb[0].mxu0
      %v1041 = vpop.f32.mrb[0].mxu0
      %v1042 = vadd.f32 0.0, %v1041
      %v1043 = vpop.f32.mrb[0].mxu0
      %1044 = vmatprep.mubr.bf16.mxu0 %v633
      %1045 = vmatmul.mubr.bf16.gmra.mrb[0].mxu0 %v632
      %v1046 = vpop.f32.mrb[0].mxu0
      %v1047 = vadd.f32 0.0, %v1046
      %v1048 = vpop.f32.mrb[0].mxu0
      %v1049 = vpop.f32.mrb[0].mxu0
      %v1050 = vadd.f32 0.0, %v1049
      %v1051 = vpop.f32.mrb[0].mxu0
      %1052 = vdwg.mxu0
      %1053 = vmatprep.subr.bf16.mxu0 0
      %1054 = vmatpush1.bf16.msra.mxu0 %v844
      %1055 = vmatprep.subr.bf16.mxu0 0
      %1056 = vmatpush1.bf16.msra.mxu0 %v845
      %1057 = vmatprep.subr.bf16.mxu0 0
      %1058 = vmatpush1.bf16.msra.mxu0 %v846
      %1059 = vmatprep.subr.bf16.mxu0 0
      %1060 = vmatpush1.bf16.msra.mxu0 %v847
      %1061 = vmatprep.subr.bf16.mxu0 0
      %1062 = vmatpush1.bf16.msra.mxu0 %v848
      %1063 = vmatprep.subr.bf16.mxu0 0
      %1064 = vmatpush1.bf16.msra.mxu0 %v849
      %1065 = vmatprep.subr.bf16.mxu0 0
      %1066 = vmatpush1.bf16.msra.mxu0 %v850
      %1067 = vmatprep.subr.bf16.mxu0 0
      %1068 = vmatpush1.bf16.msra.mxu0 %v851
      %1069 = vmatprep.subr.bf16.mxu0 0
      %1070 = vmatpush1.bf16.msra.mxu0 %v852
      %1071 = vmatprep.subr.bf16.mxu0 0
      %1072 = vmatpush1.bf16.msra.mxu0 %v853
      %1073 = vmatprep.subr.bf16.mxu0 0
      %1074 = vmatpush1.bf16.msra.mxu0 %v854
      %1075 = vmatprep.subr.bf16.mxu0 0
      %1076 = vmatpush1.bf16.msra.mxu0 %v855
      %1077 = vmatprep.subr.bf16.mxu0 0
      %1078 = vmatpush1.bf16.msra.mxu0 %v856
      %1079 = vmatprep.subr.bf16.mxu0 0
      %1080 = vmatpush1.bf16.msra.mxu0 %v857
      %1081 = vmatprep.subr.bf16.mxu0 0
      %1082 = vmatpush1.bf16.msra.mxu0 %v858
      %1083 = vmatprep.subr.bf16.mxu0 0
      %1084 = vmatpush1.bf16.msra.mxu0 %v859
      %1085 = vmatprep.mubr.bf16.mxu0 %v575
      %1086 = vmatmul.mubr.bf16.gmra.mrb[0].mxu0 %v574
      %v1087 = vpop.f32.mrb[0].mxu0
      %v1088 = vadd.f32 %v927, %v1087
      %v1089 = vpop.f32.mrb[0].mxu0
      %v1090 = vpop.f32.mrb[0].mxu0
      %v1091 = vadd.f32 %v930, %v1090
      %v1092 = vpop.f32.mrb[0].mxu0
      %1093 = vmatprep.mubr.bf16.mxu0 %v579
      %1094 = vmatmul.mubr.bf16.gmra.mrb[0].mxu0 %v578
      %v1095 = vpop.f32.mrb[0].mxu0
      %v1096 = vadd.f32 %v935, %v1095
      %v1097 = vpop.f32.mrb[0].mxu0
      %v1098 = vpop.f32.mrb[0].mxu0
      %v1099 = vadd.f32 %v938, %v1098
      %v1100 = vpop.f32.mrb[0].mxu0
      %1101 = vmatprep.mubr.bf16.mxu0 %v583
      %1102 = vmatmul.mubr.bf16.gmra.mrb[0].mxu0 %v582
      %v1103 = vpop.f32.mrb[0].mxu0
      %v1104 = vadd.f32 %v943, %v1103
      %v1105 = vpop.f32.mrb[0].mxu0
      %v1106 = vpop.f32.mrb[0].mxu0
      %v1107 = vadd.f32 %v946, %v1106
      %v1108 = vpop.f32.mrb[0].mxu0
      %1109 = vmatprep.mubr.bf16.mxu0 %v587
      %1110 = vmatmul.mubr.bf16.gmra.mrb[0].mxu0 %v586
      %v1111 = vpop.f32.mrb[0].mxu0
      %v1112 = vadd.f32 %v951, %v1111
      %v1113 = vpop.f32.mrb[0].mxu0
      %v1114 = vpop.f32.mrb[0].mxu0
      %v1115 = vadd.f32 %v954, %v1114
      %v1116 = vpop.f32.mrb[0].mxu0
      %1117 = vmatprep.mubr.bf16.mxu0 %v591
      %1118 = vmatmul.mubr.bf16.gmra.mrb[0].mxu0 %v590
      %v1119 = vpop.f32.mrb[0].mxu0
      %v1120 = vadd.f32 %v959, %v1119
      %v1121 = vpop.f32.mrb[0].mxu0
      %v1122 = vpop.f32.mrb[0].mxu0
      %v1123 = vadd.f32 %v962, %v1122
      %v1124 = vpop.f32.mrb[0].mxu0
      %1125 = vmatprep.mubr.bf16.mxu0 %v595
      %1126 = vmatmul.mubr.bf16.gmra.mrb[0].mxu0 %v594
      %v1127 = vpop.f32.mrb[0].mxu0
      %v1128 = vadd.f32 %v967, %v1127
      %v1129 = vpop.f32.mrb[0].mxu0
      %v1130 = vpop.f32.mrb[0].mxu0
      %v1131 = vadd.f32 %v970, %v1130
      %v1132 = vpop.f32.mrb[0].mxu0
      %1133 = vmatprep.mubr.bf16.mxu0 %v599
      %1134 = vmatmul.mubr.bf16.gmra.mrb[0].mxu0 %v598
      %v1135 = vpop.f32.mrb[0].mxu0
      %v1136 = vadd.f32 %v975, %v1135
      %v1137 = vpop.f32.mrb[0].mxu0
      %v1138 = vpop.f32.mrb[0].mxu0
      %v1139 = vadd.f32 %v978, %v1138
      %v1140 = vpop.f32.mrb[0].mxu0
      %1141 = vmatprep.mubr.bf16.mxu0 %v603
      %1142 = vmatmul.mubr.bf16.gmra.mrb[0].mxu0 %v602
      %v1143 = vpop.f32.mrb[0].mxu0
      %v1144 = vadd.f32 %v983, %v1143
      %v1145 = vpop.f32.mrb[0].mxu0
      %v1146 = vpop.f32.mrb[0].mxu0
      %v1147 = vadd.f32 %v986, %v1146
      %v1148 = vpop.f32.mrb[0].mxu0
      %1149 = vmatprep.mubr.bf16.mxu0 %v607
      %1150 = vmatmul.mubr.bf16.gmra.mrb[0].mxu0 %v606
      %v1151 = vpop.f32.mrb[0].mxu0
      %v1152 = vadd.f32 %v991, %v1151
      %v1153 = vpop.f32.mrb[0].mxu0
      %v1154 = vpop.f32.mrb[0].mxu0
      %v1155 = vadd.f32 %v994, %v1154
      %v1156 = vpop.f32.mrb[0].mxu0
      %1157 = vmatprep.mubr.bf16.mxu0 %v611
      %1158 = vmatmul.mubr.bf16.gmra.mrb[0].mxu0 %v610
      %v1159 = vpop.f32.mrb[0].mxu0
      %v1160 = vadd.f32 %v999, %v1159
      %v1161 = vpop.f32.mrb[0].mxu0
      %v1162 = vpop.f32.mrb[0].mxu0
      %v1163 = vadd.f32 %v1002, %v1162
      %v1164 = vpop.f32.mrb[0].mxu0
      %1165 = vmatprep.mubr.bf16.mxu0 %v615
      %1166 = vmatmul.mubr.bf16.gmra.mrb[0].mxu0 %v614
      %v1167 = vpop.f32.mrb[0].mxu0
      %v1168 = vadd.f32 %v1007, %v1167
      %v1169 = vpop.f32.mrb[0].mxu0
      %v1170 = vpop.f32.mrb[0].mxu0
      %v1171 = vadd.f32 %v1010, %v1170
      %v1172 = vpop.f32.mrb[0].mxu0
      %1173 = vmatprep.mubr.bf16.mxu0 %v619
      %1174 = vmatmul.mubr.bf16.gmra.mrb[0].mxu0 %v618
      %v1175 = vpop.f32.mrb[0].mxu0
      %v1176 = vadd.f32 %v1015, %v1175
      %v1177 = vpop.f32.mrb[0].mxu0
      %v1178 = vpop.f32.mrb[0].mxu0
      %v1179 = vadd.f32 %v1018, %v1178
      %v1180 = vpop.f32.mrb[0].mxu0
      %1181 = vmatprep.mubr.bf16.mxu0 %v623
      %1182 = vmatmul.mubr.bf16.gmra.mrb[0].mxu0 %v622
      %v1183 = vpop.f32.mrb[0].mxu0
      %v1184 = vadd.f32 %v1023, %v1183
      %v1185 = vpop.f32.mrb[0].mxu0
      %v1186 = vpop.f32.mrb[0].mxu0
      %v1187 = vadd.f32 %v1026, %v1186
      %v1188 = vpop.f32.mrb[0].mxu0
      %1189 = vmatprep.mubr.bf16.mxu0 %v627
      %1190 = vmatmul.mubr.bf16.gmra.mrb[0].mxu0 %v626
      %v1191 = vpop.f32.mrb[0].mxu0
      %v1192 = vadd.f32 %v1031, %v1191
      %v1193 = vpop.f32.mrb[0].mxu0
      %v1194 = vpop.f32.mrb[0].mxu0
      %v1195 = vadd.f32 %v1034, %v1194
      %v1196 = vpop.f32.mrb[0].mxu0
      %1197 = vmatprep.mubr.bf16.mxu0 %v631
      %1198 = vmatmul.mubr.bf16.gmra.mrb[0].mxu0 %v630
      %v1199 = vpop.f32.mrb[0].mxu0
      %v1200 = vadd.f32 %v1039, %v1199
      %v1201 = vpop.f32.mrb[0].mxu0
      %v1202 = vpop.f32.mrb[0].mxu0
      %v1203 = vadd.f32 %v1042, %v1202
      %v1204 = vpop.f32.mrb[0].mxu0
      %1205 = vmatprep.mubr.bf16.mxu0 %v635
      %1206 = vmatmul.mubr.bf16.gmra.mrb[0].mxu0 %v634
      %v1207 = vpop.f32.mrb[0].mxu0
      %v1208 = vadd.f32 %v1047, %v1207
      %v1209 = vpop.f32.mrb[0].mxu0
      %v1210 = vpop.f32.mrb[0].mxu0
      %v1211 = vadd.f32 %v1050, %v1210
      %v1212 = vpop.f32.mrb[0].mxu0
      %1213 = vdwg.mxu0
      %v1214 = vadd.f32 %v216, %v1088
      %v1215 = vadd.f32 %v217, %v1091
      %v1216 = vadd.f32 %v218, %v1096
      %v1217 = vadd.f32 %v219, %v1099
      %v1218 = vadd.f32 %v220, %v1104
      %v1219 = vadd.f32 %v221, %v1107
      %v1220 = vadd.f32 %v222, %v1112
      %v1221 = vadd.f32 %v223, %v1115
      %v1222 = vadd.f32 %v224, %v1120
      %v1223 = vadd.f32 %v225, %v1123
      %v1224 = vadd.f32 %v226, %v1128
      %v1225 = vadd.f32 %v227, %v1131
      %v1226 = vadd.f32 %v228, %v1136
      %v1227 = vadd.f32 %v229, %v1139
      %v1228 = vadd.f32 %v230, %v1144
      %v1229 = vadd.f32 %v231, %v1147
      %v1230 = vadd.f32 %v232, %v1152
      %v1231 = vadd.f32 %v233, %v1155
      %v1232 = vadd.f32 %v234, %v1160
      %v1233 = vadd.f32 %v235, %v1163
      %v1234 = vadd.f32 %v236, %v1168
      %v1235 = vadd.f32 %v237, %v1171
      %v1236 = vadd.f32 %v238, %v1176
      %v1237 = vadd.f32 %v239, %v1179
      %v1238 = vadd.f32 %v240, %v1184
      %v1239 = vadd.f32 %v241, %v1187
      %v1240 = vadd.f32 %v242, %v1192
      %v1241 = vadd.f32 %v243, %v1195
      %v1242 = vadd.f32 %v244, %v1200
      %v1243 = vadd.f32 %v245, %v1203
      %v1244 = vadd.f32 %v246, %v1208
      %v1245 = vadd.f32 %v247, %v1211
      %1246 = vst [vmem:[#allocation2] sm:$0xff] %v1214
      %1247 = vst [vmem:[#allocation2 + $0x8] sm:$0xff] %v1215
      %1248 = vst [vmem:[#allocation2 + $0x10] sm:$0xff] %v1216
      %1249 = vst [vmem:[#allocation2 + $0x18] sm:$0xff] %v1217
      %1250 = vst [vmem:[#allocation2 + $0x20] sm:$0xff] %v1218
      %1251 = vst [vmem:[#allocation2 + $0x28] sm:$0xff] %v1219
      %1252 = vst [vmem:[#allocation2 + $0x30] sm:$0xff] %v1220
      %1253 = vst [vmem:[#allocation2 + $0x38] sm:$0xff] %v1221
      %1254 = vst [vmem:[#allocation2 + $0x40] sm:$0xff] %v1222
      %1255 = vst [vmem:[#allocation2 + $0x48] sm:$0xff] %v1223
      %1256 = vst [vmem:[#allocation2 + $0x50] sm:$0xff] %v1224
      %1257 = vst [vmem:[#allocation2 + $0x58] sm:$0xff] %v1225
      %1258 = vst [vmem:[#allocation2 + $0x60] sm:$0xff] %v1226
      %1259 = vst [vmem:[#allocation2 + $0x68] sm:$0xff] %v1227
      %1260 = vst [vmem:[#allocation2 + $0x70] sm:$0xff] %v1228
      %1261 = vst [vmem:[#allocation2 + $0x78] sm:$0xff] %v1229
      %1262 = vst [vmem:[#allocation2 + $0x80] sm:$0xff] %v1230
      %1263 = vst [vmem:[#allocation2 + $0x88] sm:$0xff] %v1231
      %1264 = vst [vmem:[#allocation2 + $0x90] sm:$0xff] %v1232
      %1265 = vst [vmem:[#allocation2 + $0x98] sm:$0xff] %v1233
      %1266 = vst [vmem:[#allocation2 + $0xa0] sm:$0xff] %v1234
      %1267 = vst [vmem:[#allocation2 + $0xa8] sm:$0xff] %v1235
      %1268 = vst [vmem:[#allocation2 + $0xb0] sm:$0xff] %v1236
      %1269 = vst [vmem:[#allocation2 + $0xb8] sm:$0xff] %v1237
      %1270 = vst [vmem:[#allocation2 + $0xc0] sm:$0xff] %v1238
      %1271 = vst [vmem:[#allocation2 + $0xc8] sm:$0xff] %v1239
      %1272 = vst [vmem:[#allocation2 + $0xd0] sm:$0xff] %v1240
      %1273 = vst [vmem:[#allocation2 + $0xd8] sm:$0xff] %v1241
      %1274 = vst [vmem:[#allocation2 + $0xe0] sm:$0xff] %v1242
      %1275 = vst [vmem:[#allocation2 + $0xe8] sm:$0xff] %v1243
      %1276 = vst [vmem:[#allocation2 + $0xf0] sm:$0xff] %v1244
      %1277 = vst [vmem:[#allocation2 + $0xf8] sm:$0xff] %v1245
      // Predicated region
      $region33: #{gcn_model_forward.2} parent=27 // pred_check
        %p1278 = pneg %p179
      $region34: #{gcn_model_forward.2} parent=27 // pred_check_branch
        %1280 = sbr.rel (%p1278) target = $region36
      $region35: #{gcn_model_forward.2} parent=27 // pred_region
        %v1281 = vld [vmem:[#allocation2] sm:$0xff]
        %v1282 = vld [vmem:[#allocation2 + $0x8] sm:$0xff]
        %v1283 = vld [vmem:[#allocation2 + $0x10] sm:$0xff]
        %v1284 = vld [vmem:[#allocation2 + $0x18] sm:$0xff]
        %v1285 = vld [vmem:[#allocation2 + $0x20] sm:$0xff]
        %v1286 = vld [vmem:[#allocation2 + $0x28] sm:$0xff]
        %v1287 = vld [vmem:[#allocation2 + $0x30] sm:$0xff]
        %v1288 = vld [vmem:[#allocation2 + $0x38] sm:$0xff]
        %v1289 = vld [vmem:[#allocation2 + $0x40] sm:$0xff]
        %v1290 = vld [vmem:[#allocation2 + $0x48] sm:$0xff]
        %v1291 = vld [vmem:[#allocation2 + $0x50] sm:$0xff]
        %v1292 = vld [vmem:[#allocation2 + $0x58] sm:$0xff]
        %v1293 = vld [vmem:[#allocation2 + $0x60] sm:$0xff]
        %v1294 = vld [vmem:[#allocation2 + $0x68] sm:$0xff]
        %v1295 = vld [vmem:[#allocation2 + $0x70] sm:$0xff]
        %v1296 = vld [vmem:[#allocation2 + $0x78] sm:$0xff]
        %v1297 = vld [vmem:[#allocation2 + $0x80] sm:$0xff]
        %v1298 = vld [vmem:[#allocation2 + $0x88] sm:$0xff]
        %v1299 = vld [vmem:[#allocation2 + $0x90] sm:$0xff]
        %v1300 = vld [vmem:[#allocation2 + $0x98] sm:$0xff]
        %v1301 = vld [vmem:[#allocation2 + $0xa0] sm:$0xff]
        %v1302 = vld [vmem:[#allocation2 + $0xa8] sm:$0xff]
        %v1303 = vld [vmem:[#allocation2 + $0xb0] sm:$0xff]
        %v1304 = vld [vmem:[#allocation2 + $0xb8] sm:$0xff]
        %v1305 = vld [vmem:[#allocation2 + $0xc0] sm:$0xff]
        %v1306 = vld [vmem:[#allocation2 + $0xc8] sm:$0xff]
        %v1307 = vld [vmem:[#allocation2 + $0xd0] sm:$0xff]
        %v1308 = vld [vmem:[#allocation2 + $0xd8] sm:$0xff]
        %v1309 = vld [vmem:[#allocation2 + $0xe0] sm:$0xff]
        %v1310 = vld [vmem:[#allocation2 + $0xe8] sm:$0xff]
        %v1311 = vld [vmem:[#allocation2 + $0xf0] sm:$0xff]
        %v1312 = vld [vmem:[#allocation2 + $0xf8] sm:$0xff]
        %v1313 = vmax.f32 %v1281, 0.0
        %v1314 = vmax.f32 %v1282, 0.0
        %v1315 = vmax.f32 %v1283, 0.0
        %v1316 = vmax.f32 %v1284, 0.0
        %v1317 = vmax.f32 %v1285, 0.0
        %v1318 = vmax.f32 %v1286, 0.0
        %v1319 = vmax.f32 %v1287, 0.0
        %v1320 = vmax.f32 %v1288, 0.0
        %v1321 = vmax.f32 %v1289, 0.0
        %v1322 = vmax.f32 %v1290, 0.0
        %v1323 = vmax.f32 %v1291, 0.0
        %v1324 = vmax.f32 %v1292, 0.0
        %v1325 = vmax.f32 %v1293, 0.0
        %v1326 = vmax.f32 %v1294, 0.0
        %v1327 = vmax.f32 %v1295, 0.0
        %v1328 = vmax.f32 %v1296, 0.0
        %v1329 = vmax.f32 %v1297, 0.0
        %v1330 = vmax.f32 %v1298, 0.0
        %v1331 = vmax.f32 %v1299, 0.0
        %v1332 = vmax.f32 %v1300, 0.0
        %v1333 = vmax.f32 %v1301, 0.0
        %v1334 = vmax.f32 %v1302, 0.0
        %v1335 = vmax.f32 %v1303, 0.0
        %v1336 = vmax.f32 %v1304, 0.0
        %v1337 = vmax.f32 %v1305, 0.0
        %v1338 = vmax.f32 %v1306, 0.0
        %v1339 = vmax.f32 %v1307, 0.0
        %v1340 = vmax.f32 %v1308, 0.0
        %v1341 = vmax.f32 %v1309, 0.0
        %v1342 = vmax.f32 %v1310, 0.0
        %v1343 = vmax.f32 %v1311, 0.0
        %v1344 = vmax.f32 %v1312, 0.0
        %v1345 = vpack.c.bf16 %v1314, %v1313
        %v1346 = vpack.c.bf16 %v1316, %v1315
        %v1347 = vpack.c.bf16 %v1318, %v1317
        %v1348 = vpack.c.bf16 %v1320, %v1319
        %v1349 = vpack.c.bf16 %v1322, %v1321
        %v1350 = vpack.c.bf16 %v1324, %v1323
        %v1351 = vpack.c.bf16 %v1326, %v1325
        %v1352 = vpack.c.bf16 %v1328, %v1327
        %v1353 = vpack.c.bf16 %v1330, %v1329
        %v1354 = vpack.c.bf16 %v1332, %v1331
        %v1355 = vpack.c.bf16 %v1334, %v1333
        %v1356 = vpack.c.bf16 %v1336, %v1335
        %v1357 = vpack.c.bf16 %v1338, %v1337
        %v1358 = vpack.c.bf16 %v1340, %v1339
        %v1359 = vpack.c.bf16 %v1342, %v1341
        %v1360 = vpack.c.bf16 %v1344, %v1343
        %1361 = vst [vmem:[%s176] sm:$0xff] %v1345
        %1362 = vst [vmem:[%s176 + $0x8] sm:$0xff] %v1346
        %1363 = vst [vmem:[%s176 + $0x10] sm:$0xff] %v1347
        %1364 = vst [vmem:[%s176 + $0x18] sm:$0xff] %v1348
        %1365 = vst [vmem:[%s176 + $0x20] sm:$0xff] %v1349
        %1366 = vst [vmem:[%s176 + $0x28] sm:$0xff] %v1350
        %1367 = vst [vmem:[%s176 + $0x30] sm:$0xff] %v1351
        %1368 = vst [vmem:[%s176 + $0x38] sm:$0xff] %v1352
        %1369 = vst [vmem:[%s176 + $0x40] sm:$0xff] %v1353
        %1370 = vst [vmem:[%s176 + $0x48] sm:$0xff] %v1354
        %1371 = vst [vmem:[%s176 + $0x50] sm:$0xff] %v1355
        %1372 = vst [vmem:[%s176 + $0x58] sm:$0xff] %v1356
        %1373 = vst [vmem:[%s176 + $0x60] sm:$0xff] %v1357
        %1374 = vst [vmem:[%s176 + $0x68] sm:$0xff] %v1358
        %1375 = vst [vmem:[%s176 + $0x70] sm:$0xff] %v1359
        %1376 = vst [vmem:[%s176 + $0x78] sm:$0xff] %v1360
      $region36: #{gcn_model_forward.2} parent=27 // pred_fallthru
        _
      %s1377 = smul.u32 16, %s17
      %p1378 = scmp.lt.s32.totalorder %s1377, 31
      %s1379 = scalar_select %p1378, %s1377, 31
      %s1380 = smul.addr %s1379, 8
      %s1381 = scalar_lea.vmem %s2, %s1380
      // Predicated region
      $region37: #{gcn_model_forward.2} parent=27 // pred_check
        %p1382 = pneg %p92
      $region38: #{gcn_model_forward.2} parent=27 // pred_check_branch
        %1384 = sbr.rel (%p1382) target = $region40
      $region39: #{gcn_model_forward.2} parent=27 // pred_region
        %s1385 = smul.u32 16, %s17
      $region40: #{gcn_model_forward.2} parent=27 // pred_fallthru
        _
    $region28: #{gcn_model_forward.2} parent=5 // pred_fallthru
      _
    %p1386 = scmp.le.s32.totalorder 2, %s8
    // Predicated region
    $region41: #{gcn_model_forward.2} parent=5 // pred_check
      %p1387 = pneg %p1386
    $region42: #{gcn_model_forward.2} parent=5 // pred_check_branch
      %1389 = sbr.rel (%p1387) target = $region44
    $region43: #{gcn_model_forward.2} parent=5 // pred_region
      %s1390 = ssub.s32 %s8, 2
      // Predicated region
      $region45: #{gcn_model_forward.2} parent=43 // pred_check
        %p1391 = pneg %p98
      $region46: #{gcn_model_forward.2} parent=43 // pred_check_branch
        %1393 = sbr.rel (%p1391) target = $region48
      $region47: #{gcn_model_forward.2} parent=43 // pred_region
        %s1394 = smul.u32 16, %s19
        %p1395 = scmp.lt.s32.totalorder %s1394, 31
        %s1396 = scalar_select %p1395, %s1394, 31
        %s1397 = smul.addr %s1396, 8
        %s1398 = scalar_lea.vmem %s2, %s1397
      $region48: #{gcn_model_forward.2} parent=43 // pred_fallthru
        _
    $region44: #{gcn_model_forward.2} parent=5 // pred_fallthru
      _
  $region6: #{gcn_model_forward.2} parent=0 // loop_footer
    %s12 = sadd.s32 1, %s8
  $region7: #{gcn_model_forward.2} parent=0 // loop_footer_branch
    %7 = sbr.rel target = $region3
  $region8: #{gcn_model_forward.2} parent=0 // loop_exit
    _

// kernel: gcn_model_forward.3
$region0: #{gcn_model_forward.3}
  #allocation0 [shape = 'u32[]', space=smem, size = 0x4, offset = 0x4, fixed_abs, tag = 'smem constant byte address 0x4 - core index']
  #allocation1 [shape = 'u32[144,128]{1,0:T(1,128)}', space=vmem, size = 0x12000, scoped, tag = 'internal scratch']
  #allocation2 [shape = 'f32[256,128]{1,0:T(8,128)}', space=vmem, size = 0x20000, scoped, tag = 'scratch operand']
  %s0 = inlined_call_operand.vmem [shape: bf16[512,512], index: 0, kind: input, shape index: {}]
  %s1 = inlined_call_operand.vmem [shape: bf16[512,128], index: 1, kind: input, shape index: {}]
  %s2 = inlined_call_operand.vmem [shape: bf16[512,128], index: 2, kind: output, shape index: {}]
  %s3 = sld [smem:[#allocation0]]
  $region49: #{gcn_model_forward.3} parent=0
    _
  %s5 = ssub.s32 1, %s3
  %s6 = scalar_select 0, %s5, %s3
  loop: start=0, step=1, limit=4
  $region2: #{gcn_model_forward.3} parent=0 // loop_pre_header
    _
  $region3: #{gcn_model_forward.3} parent=0 // loop_header
    %s8 = sphi 0, %s12
    %p9 = scmp.ge.s32.totalorder %s8, 4
    %s15 = sphi 0, %s27
    %s16 = sphi 0, %s23
    %s17 = sphi 0, %s15
    %s18 = sphi 0, %s16
    %s19 = sphi 0, %s17
    %s20 = sphi 0, %s18
    %s32 = sphi 0, %s34
    %s35 = sphi 0, %s32
    %s36 = sphi 0, %s35
    %s52 = sphi 0, %s36
    %s56 = sphi 0, %s56
    %s58 = sphi 0, %s56
    %s59 = sphi 0, %s58
    %s73 = sphi 0, %s59
    %s79 = sphi 0, %s81
    %s82 = sphi 0, %s79
    %s83 = sphi 0, %s82
    %s99 = sphi 0, %s83
  $region4: #{gcn_model_forward.3} parent=0 // loop_header_branch
    %11 = sbr.rel (%p9) target = $region8
  $region5: #{gcn_model_forward.3} parent=0 // loop_body
    %s13 = ssub.s32 %s8, 1
    %s14 = ssub.s32 %s8, 2
    %s21 = sadd.s32 1, %s16
    %p22 = scmp.ge.s32.totalorder %s21, 1
    %s23 = scalar_select %p22, 0, %s21
    %s24 = sadd.s32 1, %s15
    %s25 = scalar_select %p22, %s24, %s15
    %p26 = scmp.ge.s32.totalorder %s25, 2
    %s27 = scalar_select %p26, 0, %s25
    %s28 = ssub.s32 %s15, %s27
    %s29 = ssub.s32 %s16, %s23
    %s30 = sor.u32 %s28, %s29
    %p31 = scmp.eq.s32.totalorder %s30, 0
    %s33 = sadd.s32 %s32, 1
    %s34 = scalar_select %p31, %s32, %s33
    %p37 = pneg %p31
    %p38 = scmp.eq.s32.totalorder %s8, 1
    %p39 = por %p37, %p38
    %p40 = scmp.ne.s32.totalorder %s32, %s35
    %p41 = scmp.eq.s32.totalorder %s8, 0
    %p42 = por %p40, %p41
    %p43 = scmp.ne.s32.totalorder %s32, %s35
    %p44 = scmp.eq.s32.totalorder %s13, 1
    %p45 = por %p43, %p44
    %p46 = scmp.ne.s32.totalorder %s35, %s36
    %p47 = scmp.eq.s32.totalorder %s13, 0
    %p48 = por %p46, %p47
    %p49 = scmp.ne.s32.totalorder %s35, %s36
    %p50 = scmp.eq.s32.totalorder %s14, 1
    %p51 = por %p49, %p50
    %p53 = scmp.ne.s32.totalorder %s36, %s52
    %p54 = scmp.eq.s32.totalorder %s14, 0
    %p55 = por %p53, %p54
    %s57 = sadd.s32 %s56, 1
    %p60 = scmp.eq.s32.totalorder %s8, 1
    %p61 = scmp.ne.s32.totalorder %s56, %s58
    %p62 = scmp.eq.s32.totalorder %s8, 0
    %p63 = por %p61, %p62
    %p64 = scmp.ne.s32.totalorder %s56, %s58
    %p65 = scmp.eq.s32.totalorder %s13, 1
    %p66 = por %p64, %p65
    %p67 = scmp.ne.s32.totalorder %s58, %s59
    %p68 = scmp.eq.s32.totalorder %s13, 0
    %p69 = por %p67, %p68
    %p70 = scmp.ne.s32.totalorder %s58, %s59
    %p71 = scmp.eq.s32.totalorder %s14, 1
    %p72 = por %p70, %p71
    %p74 = scmp.ne.s32.totalorder %s59, %s73
    %p75 = scmp.eq.s32.totalorder %s14, 0
    %p76 = por %p74, %p75
    %s77 = ssub.s32 %s15, %s27
    %p78 = scmp.eq.s32.totalorder %s77, 0
    %s80 = sadd.s32 %s79, 1
    %s81 = scalar_select %p78, %s79, %s80
    %p84 = pneg %p78
    %p85 = scmp.eq.s32.totalorder %s8, 1
    %p86 = por %p84, %p85
    %p87 = scmp.ne.s32.totalorder %s79, %s82
    %p88 = scmp.eq.s32.totalorder %s8, 0
    %p89 = por %p87, %p88
    %p90 = scmp.ne.s32.totalorder %s79, %s82
    %p91 = scmp.eq.s32.totalorder %s13, 1
    %p92 = por %p90, %p91
    %p93 = scmp.ne.s32.totalorder %s82, %s83
    %p94 = scmp.eq.s32.totalorder %s13, 0
    %p95 = por %p93, %p94
    %p96 = scmp.ne.s32.totalorder %s82, %s83
    %p97 = scmp.eq.s32.totalorder %s14, 1
    %p98 = por %p96, %p97
    %p100 = scmp.ne.s32.totalorder %s83, %s99
    %p101 = scmp.eq.s32.totalorder %s14, 0
    %p102 = por %p100, %p101
    %p103 = scmp.le.s32.totalorder 1, %s8
    %p104 = scmp.lt.s32.totalorder %s8, 3
    %p105 = pnand %p103, %p104
    %p106 = pneg %p105
    // Predicated region
    $region9: #{gcn_model_forward.3} parent=5 // pred_check
      _
    $region10: #{gcn_model_forward.3} parent=5 // pred_check_branch
      %108 = sbr.rel (%p105) target = $region12
    $region11: #{gcn_model_forward.3} parent=5 // pred_region
      %s109 = ssub.s32 %s8, 1
      // Predicated region
      $region13: #{gcn_model_forward.3} parent=11 // pred_check
        %p110 = pneg %p69
      $region14: #{gcn_model_forward.3} parent=11 // pred_check_branch
        %112 = sbr.rel (%p110) target = $region16
      $region15: #{gcn_model_forward.3} parent=11 // pred_region
        _
      $region16: #{gcn_model_forward.3} parent=11 // pred_fallthru
        _
    $region12: #{gcn_model_forward.3} parent=5 // pred_fallthru
      _
    %p113 = scmp.lt.s32.totalorder %s8, 2
    // Predicated region
    $region17: #{gcn_model_forward.3} parent=5 // pred_check
      %p114 = pneg %p113
    $region18: #{gcn_model_forward.3} parent=5 // pred_check_branch
      %116 = sbr.rel (%p114) target = $region20
    $region19: #{gcn_model_forward.3} parent=5 // pred_region
      // Predicated region
      $region21: #{gcn_model_forward.3} parent=19 // pred_check
        %p117 = pneg %p42
      $region22: #{gcn_model_forward.3} parent=19 // pred_check_branch
        %119 = sbr.rel (%p117) target = $region24
      $region23: #{gcn_model_forward.3} parent=19 // pred_region
        %s120 = smul.u32 32, %s15
        %s121 = smul.u32 4, %s16
        %p122 = scmp.lt.s32.totalorder %s120, 63
        %s123 = scalar_select %p122, %s120, 63
        %p124 = scmp.lt.s32.totalorder %s121, 3
        %s125 = scalar_select %p124, %s121, 3
        %s126 = smul.addr %s123, 4
        %s127 = sadd.s32 %s125, %s126
        %s128 = smul.addr %s127, 4
        %s129 = scalar_lea.vmem %s0, %s128
        %s130 = smul.u32 32, %s15
        %s131 = smul.u32 4, %s16
      $region24: #{gcn_model_forward.3} parent=19 // pred_fallthru
        _
    $region20: #{gcn_model_forward.3} parent=5 // pred_fallthru
      _
    %p132 = scmp.le.s32.totalorder 1, %s8
    %p133 = scmp.lt.s32.totalorder %s8, 3
    %p134 = pnand %p132, %p133
    %p135 = pneg %p134
    // Predicated region
    $region25: #{gcn_model_forward.3} parent=5 // pred_check
      _
    $region26: #{gcn_model_forward.3} parent=5 // pred_check_branch
      %137 = sbr.rel (%p134) target = $region28
    $region27: #{gcn_model_forward.3} parent=5 // pred_region
      %s138 = ssub.s32 %s8, 1
      %s139 = smul.u32 32, %s17
      %s140 = smul.u32 4, %s18
      %p141 = scmp.lt.s32.totalorder %s139, 63
      %s142 = scalar_select %p141, %s139, 63
      %p143 = scmp.lt.s32.totalorder %s140, 3
      %s144 = scalar_select %p143, %s140, 3
      %s145 = smul.addr %s142, 4
      %s146 = sadd.s32 %s144, %s145
      %s147 = smul.addr %s146, 4
      %s148 = scalar_lea.vmem %s0, %s147
      %p149 = pneg %p48
      %p150 = pneg %p45
      %p151 = pneg %p69
      %p152 = pneg %p66
      %p153 = pneg %p95
      %p154 = pneg %p92
      %s155 = smul.u32 32, %s17
      %p156 = scmp.lt.s32.totalorder %s155, 63
      %s157 = scalar_select %p156, %s155, 63
      %s158 = smul.addr %s157, 4
      %s159 = scalar_lea.vmem %s2, %s158
      %s160 = smul.u32 32, %s17
      %s161 = smul.u32 4, %s18
      %p162 = scmp.lt.s32.totalorder %s160, 63
      %s163 = scalar_select %p162, %s160, 63
      %p164 = scmp.lt.s32.totalorder %s161, 3
      %s165 = scalar_select %p164, %s161, 3
      %s166 = smul.addr %s163, 4
      %s167 = sadd.s32 %s165, %s166
      %s168 = smul.addr %s167, 4
      %s169 = scalar_lea.vmem %s0, %s168
      %s170 = smul.u32 32, %s17
      %s171 = smul.u32 4, %s18
      %s172 = smul.u32 32, %s17
      %p173 = scmp.lt.s32.totalorder %s172, 63
      %s174 = scalar_select %p173, %s172, 63
      %s175 = smul.addr %s174, 4
      %s176 = scalar_lea.vmem %s2, %s175
      %s177 = smul.u32 32, %s17
      %p179 = scmp.eq.s32.totalorder %s18, 0
      // Predicated region
      $region29: #{gcn_model_forward.3} parent=27 // pred_check
        %p180 = pneg %p179
      $region30: #{gcn_model_forward.3} parent=27 // pred_check_branch
        %182 = sbr.rel (%p180) target = $region32
      $region31: #{gcn_model_forward.3} parent=27 // pred_region
        %183 = vst [vmem:[#allocation2] sm:$0xff] 0.0
        %184 = vst [vmem:[#allocation2 + $0x8] sm:$0xff] 0.0
        %185 = vst [vmem:[#allocation2 + $0x10] sm:$0xff] 0.0
        %186 = vst [vmem:[#allocation2 + $0x18] sm:$0xff] 0.0
        %187 = vst [vmem:[#allocation2 + $0x20] sm:$0xff] 0.0
        %188 = vst [vmem:[#allocation2 + $0x28] sm:$0xff] 0.0
        %189 = vst [vmem:[#allocation2 + $0x30] sm:$0xff] 0.0
        %190 = vst [vmem:[#allocation2 + $0x38] sm:$0xff] 0.0
        %191 = vst [vmem:[#allocation2 + $0x40] sm:$0xff] 0.0
        %192 = vst [vmem:[#allocation2 + $0x48] sm:$0xff] 0.0
        %193 = vst [vmem:[#allocation2 + $0x50] sm:$0xff] 0.0
        %194 = vst [vmem:[#allocation2 + $0x58] sm:$0xff] 0.0
        %195 = vst [vmem:[#allocation2 + $0x60] sm:$0xff] 0.0
        %196 = vst [vmem:[#allocation2 + $0x68] sm:$0xff] 0.0
        %197 = vst [vmem:[#allocation2 + $0x70] sm:$0xff] 0.0
        %198 = vst [vmem:[#allocation2 + $0x78] sm:$0xff] 0.0
        %199 = vst [vmem:[#allocation2 + $0x80] sm:$0xff] 0.0
        %200 = vst [vmem:[#allocation2 + $0x88] sm:$0xff] 0.0
        %201 = vst [vmem:[#allocation2 + $0x90] sm:$0xff] 0.0
        %202 = vst [vmem:[#allocation2 + $0x98] sm:$0xff] 0.0
        %203 = vst [vmem:[#allocation2 + $0xa0] sm:$0xff] 0.0
        %204 = vst [vmem:[#allocation2 + $0xa8] sm:$0xff] 0.0
        %205 = vst [vmem:[#allocation2 + $0xb0] sm:$0xff] 0.0
        %206 = vst [vmem:[#allocation2 + $0xb8] sm:$0xff] 0.0
        %207 = vst [vmem:[#allocation2 + $0xc0] sm:$0xff] 0.0
        %208 = vst [vmem:[#allocation2 + $0xc8] sm:$0xff] 0.0
        %209 = vst [vmem:[#allocation2 + $0xd0] sm:$0xff] 0.0
        %210 = vst [vmem:[#allocation2 + $0xd8] sm:$0xff] 0.0
        %211 = vst [vmem:[#allocation2 + $0xe0] sm:$0xff] 0.0
        %212 = vst [vmem:[#allocation2 + $0xe8] sm:$0xff] 0.0
        %213 = vst [vmem:[#allocation2 + $0xf0] sm:$0xff] 0.0
        %214 = vst [vmem:[#allocation2 + $0xf8] sm:$0xff] 0.0
      $region32: #{gcn_model_forward.3} parent=27 // pred_fallthru
        _
      %s215 = smul.u32 %s18, 512
      %v216 = vld [vmem:[#allocation2] sm:$0xff]
      %v217 = vld [vmem:[#allocation2 + $0x8] sm:$0xff]
      %v218 = vld [vmem:[#allocation2 + $0x10] sm:$0xff]
      %v219 = vld [vmem:[#allocation2 + $0x18] sm:$0xff]
      %v220 = vld [vmem:[#allocation2 + $0x20] sm:$0xff]
      %v221 = vld [vmem:[#allocation2 + $0x28] sm:$0xff]
      %v222 = vld [vmem:[#allocation2 + $0x30] sm:$0xff]
      %v223 = vld [vmem:[#allocation2 + $0x38] sm:$0xff]
      %v224 = vld [vmem:[#allocation2 + $0x40] sm:$0xff]
      %v225 = vld [vmem:[#allocation2 + $0x48] sm:$0xff]
      %v226 = vld [vmem:[#allocation2 + $0x50] sm:$0xff]
      %v227 = vld [vmem:[#allocation2 + $0x58] sm:$0xff]
      %v228 = vld [vmem:[#allocation2 + $0x60] sm:$0xff]
      %v229 = vld [vmem:[#allocation2 + $0x68] sm:$0xff]
      %v230 = vld [vmem:[#allocation2 + $0x70] sm:$0xff]
      %v231 = vld [vmem:[#allocation2 + $0x78] sm:$0xff]
      %v232 = vld [vmem:[#allocation2 + $0x80] sm:$0xff]
      %v233 = vld [vmem:[#allocation2 + $0x88] sm:$0xff]
      %v234 = vld [vmem:[#allocation2 + $0x90] sm:$0xff]
      %v235 = vld [vmem:[#allocation2 + $0x98] sm:$0xff]
      %v236 = vld [vmem:[#allocation2 + $0xa0] sm:$0xff]
      %v237 = vld [vmem:[#allocation2 + $0xa8] sm:$0xff]
      %v238 = vld [vmem:[#allocation2 + $0xb0] sm:$0xff]
      %v239 = vld [vmem:[#allocation2 + $0xb8] sm:$0xff]
      %v240 = vld [vmem:[#allocation2 + $0xc0] sm:$0xff]
      %v241 = vld [vmem:[#allocation2 + $0xc8] sm:$0xff]
      %v242 = vld [vmem:[#allocation2 + $0xd0] sm:$0xff]
      %v243 = vld [vmem:[#allocation2 + $0xd8] sm:$0xff]
      %v244 = vld [vmem:[#allocation2 + $0xe0] sm:$0xff]
      %v245 = vld [vmem:[#allocation2 + $0xe8] sm:$0xff]
      %v246 = vld [vmem:[#allocation2 + $0xf0] sm:$0xff]
      %v247 = vld [vmem:[#allocation2 + $0xf8] sm:$0xff]
      %v248 = vld [vmem:[%s169] sm:$0xff]
      %v249 = vld [vmem:[%s169 + $0x8] sm:$0xff]
      %v250 = vld [vmem:[%s169 + $0x10] sm:$0xff]
      %v251 = vld [vmem:[%s169 + $0x18] sm:$0xff]
      %v252 = vld [vmem:[%s169 + $0x20] sm:$0xff]
      %v253 = vld [vmem:[%s169 + $0x28] sm:$0xff]
      %v254 = vld [vmem:[%s169 + $0x30] sm:$0xff]
      %v255 = vld [vmem:[%s169 + $0x38] sm:$0xff]
      %v256 = vld [vmem:[%s169 + $0x40] sm:$0xff]
      %v257 = vld [vmem:[%s169 + $0x48] sm:$0xff]
      %v258 = vld [vmem:[%s169 + $0x50] sm:$0xff]
      %v259 = vld [vmem:[%s169 + $0x58] sm:$0xff]
      %v260 = vld [vmem:[%s169 + $0x60] sm:$0xff]
      %v261 = vld [vmem:[%s169 + $0x68] sm:$0xff]
      %v262 = vld [vmem:[%s169 + $0x70] sm:$0xff]
      %v263 = vld [vmem:[%s169 + $0x78] sm:$0xff]
      %v264 = vld [vmem:[%s169 + $0x80] sm:$0xff]
      %v265 = vld [vmem:[%s169 + $0x88] sm:$0xff]
      %v266 = vld [vmem:[%s169 + $0x90] sm:$0xff]
      %v267 = vld [vmem:[%s169 + $0x98] sm:$0xff]
      %v268 = vld [vmem:[%s169 + $0xa0] sm:$0xff]
      %v269 = vld [vmem:[%s169 + $0xa8] sm:$0xff]
      %v270 = vld [vmem:[%s169 + $0xb0] sm:$0xff]
      %v271 = vld [vmem:[%s169 + $0xb8] sm:$0xff]
      %v272 = vld [vmem:[%s169 + $0xc0] sm:$0xff]
      %v273 = vld [vmem:[%s169 + $0xc8] sm:$0xff]
      %v274 = vld [vmem:[%s169 + $0xd0] sm:$0xff]
      %v275 = vld [vmem:[%s169 + $0xd8] sm:$0xff]
      %v276 = vld [vmem:[%s169 + $0xe0] sm:$0xff]
      %v277 = vld [vmem:[%s169 + $0xe8] sm:$0xff]
      %v278 = vld [vmem:[%s169 + $0xf0] sm:$0xff]
      %v279 = vld [vmem:[%s169 + $0xf8] sm:$0xff]
      %v280 = vld [vmem:[%s169 + $0x100] sm:$0xff]
      %v281 = vld [vmem:[%s169 + $0x108] sm:$0xff]
      %v282 = vld [vmem:[%s169 + $0x110] sm:$0xff]
      %v283 = vld [vmem:[%s169 + $0x118] sm:$0xff]
      %v284 = vld [vmem:[%s169 + $0x120] sm:$0xff]
      %v285 = vld [vmem:[%s169 + $0x128] sm:$0xff]
      %v286 = vld [vmem:[%s169 + $0x130] sm:$0xff]
      %v287 = vld [vmem:[%s169 + $0x138] sm:$0xff]
      %v288 = vld [vmem:[%s169 + $0x140] sm:$0xff]
      %v289 = vld [vmem:[%s169 + $0x148] sm:$0xff]
      %v290 = vld [vmem:[%s169 + $0x150] sm:$0xff]
      %v291 = vld [vmem:[%s169 + $0x158] sm:$0xff]
      %v292 = vld [vmem:[%s169 + $0x160] sm:$0xff]
      %v293 = vld [vmem:[%s169 + $0x168] sm:$0xff]
      %v294 = vld [vmem:[%s169 + $0x170] sm:$0xff]
      %v295 = vld [vmem:[%s169 + $0x178] sm:$0xff]
      %v296 = vld [vmem:[%s169 + $0x180] sm:$0xff]
      %v297 = vld [vmem:[%s169 + $0x188] sm:$0xff]
      %v298 = vld [vmem:[%s169 + $0x190] sm:$0xff]
      %v299 = vld [vmem:[%s169 + $0x198] sm:$0xff]
      %v300 = vld [vmem:[%s169 + $0x1a0] sm:$0xff]
      %v301 = vld [vmem:[%s169 + $0x1a8] sm:$0xff]
      %v302 = vld [vmem:[%s169 + $0x1b0] sm:$0xff]
      %v303 = vld [vmem:[%s169 + $0x1b8] sm:$0xff]
      %v304 = vld [vmem:[%s169 + $0x1c0] sm:$0xff]
      %v305 = vld [vmem:[%s169 + $0x1c8] sm:$0xff]
      %v306 = vld [vmem:[%s169 + $0x1d0] sm:$0xff]
      %v307 = vld [vmem:[%s169 + $0x1d8] sm:$0xff]
      %v308 = vld [vmem:[%s169 + $0x1e0] sm:$0xff]
      %v309 = vld [vmem:[%s169 + $0x1e8] sm:$0xff]
      %v310 = vld [vmem:[%s169 + $0x1f0] sm:$0xff]
      %v311 = vld [vmem:[%s169 + $0x1f8] sm:$0xff]
      %s312 = sshra.s32 %s215, 3
      %s313 = sand.u32 %s215, 7
      %s314 = smul.addr %s312, 4
      %s315 = scalar_lea.vmem %s1, %s314
      %v316 = vld [vmem:[%s315] sm:$0xf]
      %v317 = vld [vmem:[%s315 + $0x4] sm:$0xf]
      %v318 = vld [vmem:[%s315 + $0x8] sm:$0xf]
      %v319 = vld [vmem:[%s315 + $0xc] sm:$0xf]
      %v320 = vld [vmem:[%s315 + $0x10] sm:$0xf]
      %v321 = vld [vmem:[%s315 + $0x14] sm:$0xf]
      %v322 = vld [vmem:[%s315 + $0x18] sm:$0xf]
      %v323 = vld [vmem:[%s315 + $0x1c] sm:$0xf]
      %v324 = vld [vmem:[%s315 + $0x20] sm:$0xf]
      %v325 = vld [vmem:[%s315 + $0x24] sm:$0xf]
      %v326 = vld [vmem:[%s315 + $0x28] sm:$0xf]
      %v327 = vld [vmem:[%s315 + $0x2c] sm:$0xf]
      %v328 = vld [vmem:[%s315 + $0x30] sm:$0xf]
      %v329 = vld [vmem:[%s315 + $0x34] sm:$0xf]
      %v330 = vld [vmem:[%s315 + $0x38] sm:$0xf]
      %v331 = vld [vmem:[%s315 + $0x3c] sm:$0xf]
      %v332 = vld [vmem:[%s315 + $0x40] sm:$0xf]
      %v333 = vld [vmem:[%s315 + $0x44] sm:$0xf]
      %v334 = vld [vmem:[%s315 + $0x48] sm:$0xf]
      %v335 = vld [vmem:[%s315 + $0x4c] sm:$0xf]
      %v336 = vld [vmem:[%s315 + $0x50] sm:$0xf]
      %v337 = vld [vmem:[%s315 + $0x54] sm:$0xf]
      %v338 = vld [vmem:[%s315 + $0x58] sm:$0xf]
      %v339 = vld [vmem:[%s315 + $0x5c] sm:$0xf]
      %v340 = vld [vmem:[%s315 + $0x60] sm:$0xf]
      %v341 = vld [vmem:[%s315 + $0x64] sm:$0xf]
      %v342 = vld [vmem:[%s315 + $0x68] sm:$0xf]
      %v343 = vld [vmem:[%s315 + $0x6c] sm:$0xf]
      %v344 = vld [vmem:[%s315 + $0x70] sm:$0xf]
      %v345 = vld [vmem:[%s315 + $0x74] sm:$0xf]
      %v346 = vld [vmem:[%s315 + $0x78] sm:$0xf]
      %v347 = vld [vmem:[%s315 + $0x7c] sm:$0xf]
      %v348 = vld [vmem:[%s315 + $0x80] sm:$0xf]
      %v349 = vld [vmem:[%s315 + $0x84] sm:$0xf]
      %v350 = vld [vmem:[%s315 + $0x88] sm:$0xf]
      %v351 = vld [vmem:[%s315 + $0x8c] sm:$0xf]
      %v352 = vld [vmem:[%s315 + $0x90] sm:$0xf]
      %v353 = vld [vmem:[%s315 + $0x94] sm:$0xf]
      %v354 = vld [vmem:[%s315 + $0x98] sm:$0xf]
      %v355 = vld [vmem:[%s315 + $0x9c] sm:$0xf]
      %v356 = vld [vmem:[%s315 + $0xa0] sm:$0xf]
      %v357 = vld [vmem:[%s315 + $0xa4] sm:$0xf]
      %v358 = vld [vmem:[%s315 + $0xa8] sm:$0xf]
      %v359 = vld [vmem:[%s315 + $0xac] sm:$0xf]
      %v360 = vld [vmem:[%s315 + $0xb0] sm:$0xf]
      %v361 = vld [vmem:[%s315 + $0xb4] sm:$0xf]
      %v362 = vld [vmem:[%s315 + $0xb8] sm:$0xf]
      %v363 = vld [vmem:[%s315 + $0xbc] sm:$0xf]
      %v364 = vld [vmem:[%s315 + $0xc0] sm:$0xf]
      %v365 = vld [vmem:[%s315 + $0xc4] sm:$0xf]
      %v366 = vld [vmem:[%s315 + $0xc8] sm:$0xf]
      %v367 = vld [vmem:[%s315 + $0xcc] sm:$0xf]
      %v368 = vld [vmem:[%s315 + $0xd0] sm:$0xf]
      %v369 = vld [vmem:[%s315 + $0xd4] sm:$0xf]
      %v370 = vld [vmem:[%s315 + $0xd8] sm:$0xf]
      %v371 = vld [vmem:[%s315 + $0xdc] sm:$0xf]
      %v372 = vld [vmem:[%s315 + $0xe0] sm:$0xf]
      %v373 = vld [vmem:[%s315 + $0xe4] sm:$0xf]
      %v374 = vld [vmem:[%s315 + $0xe8] sm:$0xf]
      %v375 = vld [vmem:[%s315 + $0xec] sm:$0xf]
      %v376 = vld [vmem:[%s315 + $0xf0] sm:$0xf]
      %v377 = vld [vmem:[%s315 + $0xf4] sm:$0xf]
      %v378 = vld [vmem:[%s315 + $0xf8] sm:$0xf]
      %v379 = vld [vmem:[%s315 + $0xfc] sm:$0xf]
      %v444 = vunpack.c.l.b16 %v248
      %v445 = vunpack.c.h.b16 %v248
      %v446 = vunpack.c.l.b16 %v249
      %v447 = vunpack.c.h.b16 %v249
      %v448 = vunpack.c.l.b16 %v250
      %v449 = vunpack.c.h.b16 %v250
      %v450 = vunpack.c.l.b16 %v251
      %v451 = vunpack.c.h.b16 %v251
      %v452 = vunpack.c.l.b16 %v252
      %v453 = vunpack.c.h.b16 %v252
      %v454 = vunpack.c.l.b16 %v253
      %v455 = vunpack.c.h.b16 %v253
      %v456 = vunpack.c.l.b16 %v254
      %v457 = vunpack.c.h.b16 %v254
      %v458 = vunpack.c.l.b16 %v255
      %v459 = vunpack.c.h.b16 %v255
      %v460 = vunpack.c.l.b16 %v256
      %v461 = vunpack.c.h.b16 %v256
      %v462 = vunpack.c.l.b16 %v257
      %v463 = vunpack.c.h.b16 %v257
      %v464 = vunpack.c.l.b16 %v258
      %v465 = vunpack.c.h.b16 %v258
      %v466 = vunpack.c.l.b16 %v259
      %v467 = vunpack.c.h.b16 %v259
      %v468 = vunpack.c.l.b16 %v260
      %v469 = vunpack.c.h.b16 %v260
      %v470 = vunpack.c.l.b16 %v261
      %v471 = vunpack.c.h.b16 %v261
      %v472 = vunpack.c.l.b16 %v262
      %v473 = vunpack.c.h.b16 %v262
      %v474 = vunpack.c.l.b16 %v263
      %v475 = vunpack.c.h.b16 %v263
      %v476 = vunpack.c.l.b16 %v264
      %v477 = vunpack.c.h.b16 %v264
      %v478 = vunpack.c.l.b16 %v265
      %v479 = vunpack.c.h.b16 %v265
      %v480 = vunpack.c.l.b16 %v266
      %v481 = vunpack.c.h.b16 %v266
      %v482 = vunpack.c.l.b16 %v267
      %v483 = vunpack.c.h.b16 %v267
      %v484 = vunpack.c.l.b16 %v268
      %v485 = vunpack.c.h.b16 %v268
      %v486 = vunpack.c.l.b16 %v269
      %v487 = vunpack.c.h.b16 %v269
      %v488 = vunpack.c.l.b16 %v270
      %v489 = vunpack.c.h.b16 %v270
      %v490 = vunpack.c.l.b16 %v271
      %v491 = vunpack.c.h.b16 %v271
      %v492 = vunpack.c.l.b16 %v272
      %v493 = vunpack.c.h.b16 %v272
      %v494 = vunpack.c.l.b16 %v273
      %v495 = vunpack.c.h.b16 %v273
      %v496 = vunpack.c.l.b16 %v274
      %v497 = vunpack.c.h.b16 %v274
      %v498 = vunpack.c.l.b16 %v275
      %v499 = vunpack.c.h.b16 %v275
      %v500 = vunpack.c.l.b16 %v276
      %v501 = vunpack.c.h.b16 %v276
      %v502 = vunpack.c.l.b16 %v277
      %v503 = vunpack.c.h.b16 %v277
      %v504 = vunpack.c.l.b16 %v278
      %v505 = vunpack.c.h.b16 %v278
      %v506 = vunpack.c.l.b16 %v279
      %v507 = vunpack.c.h.b16 %v279
      %v508 = vunpack.c.l.b16 %v280
      %v509 = vunpack.c.h.b16 %v280
      %v510 = vunpack.c.l.b16 %v281
      %v511 = vunpack.c.h.b16 %v281
      %v512 = vunpack.c.l.b16 %v282
      %v513 = vunpack.c.h.b16 %v282
      %v514 = vunpack.c.l.b16 %v283
      %v515 = vunpack.c.h.b16 %v283
      %v516 = vunpack.c.l.b16 %v284
      %v517 = vunpack.c.h.b16 %v284
      %v518 = vunpack.c.l.b16 %v285
      %v519 = vunpack.c.h.b16 %v285
      %v520 = vunpack.c.l.b16 %v286
      %v521 = vunpack.c.h.b16 %v286
      %v522 = vunpack.c.l.b16 %v287
      %v523 = vunpack.c.h.b16 %v287
      %v524 = vunpack.c.l.b16 %v288
      %v525 = vunpack.c.h.b16 %v288
      %v526 = vunpack.c.l.b16 %v289
      %v527 = vunpack.c.h.b16 %v289
      %v528 = vunpack.c.l.b16 %v290
      %v529 = vunpack.c.h.b16 %v290
      %v530 = vunpack.c.l.b16 %v291
      %v531 = vunpack.c.h.b16 %v291
      %v532 = vunpack.c.l.b16 %v292
      %v533 = vunpack.c.h.b16 %v292
      %v534 = vunpack.c.l.b16 %v293
      %v535 = vunpack.c.h.b16 %v293
      %v536 = vunpack.c.l.b16 %v294
      %v537 = vunpack.c.h.b16 %v294
      %v538 = vunpack.c.l.b16 %v295
      %v539 = vunpack.c.h.b16 %v295
      %v540 = vunpack.c.l.b16 %v296
      %v541 = vunpack.c.h.b16 %v296
      %v542 = vunpack.c.l.b16 %v297
      %v543 = vunpack.c.h.b16 %v297
      %v544 = vunpack.c.l.b16 %v298
      %v545 = vunpack.c.h.b16 %v298
      %v546 = vunpack.c.l.b16 %v299
      %v547 = vunpack.c.h.b16 %v299
      %v548 = vunpack.c.l.b16 %v300
      %v549 = vunpack.c.h.b16 %v300
      %v550 = vunpack.c.l.b16 %v301
      %v551 = vunpack.c.h.b16 %v301
      %v552 = vunpack.c.l.b16 %v302
      %v553 = vunpack.c.h.b16 %v302
      %v554 = vunpack.c.l.b16 %v303
      %v555 = vunpack.c.h.b16 %v303
      %v556 = vunpack.c.l.b16 %v304
      %v557 = vunpack.c.h.b16 %v304
      %v558 = vunpack.c.l.b16 %v305
      %v559 = vunpack.c.h.b16 %v305
      %v560 = vunpack.c.l.b16 %v306
      %v561 = vunpack.c.h.b16 %v306
      %v562 = vunpack.c.l.b16 %v307
      %v563 = vunpack.c.h.b16 %v307
      %v564 = vunpack.c.l.b16 %v308
      %v565 = vunpack.c.h.b16 %v308
      %v566 = vunpack.c.l.b16 %v309
      %v567 = vunpack.c.h.b16 %v309
      %v568 = vunpack.c.l.b16 %v310
      %v569 = vunpack.c.h.b16 %v310
      %v570 = vunpack.c.l.b16 %v311
      %v571 = vunpack.c.h.b16 %v311
      %v572 = vpack.c.b16 %v448, %v444
      %v573 = vpack.c.b16 %v449, %v445
      %v574 = vpack.c.b16 %v450, %v446
      %v575 = vpack.c.b16 %v451, %v447
      %v576 = vpack.c.b16 %v456, %v452
      %v577 = vpack.c.b16 %v457, %v453
      %v578 = vpack.c.b16 %v458, %v454
      %v579 = vpack.c.b16 %v459, %v455
      %v580 = vpack.c.b16 %v464, %v460
      %v581 = vpack.c.b16 %v465, %v461
      %v582 = vpack.c.b16 %v466, %v462
      %v583 = vpack.c.b16 %v467, %v463
      %v584 = vpack.c.b16 %v472, %v468
      %v585 = vpack.c.b16 %v473, %v469
      %v586 = vpack.c.b16 %v474, %v470
      %v587 = vpack.c.b16 %v475, %v471
      %v588 = vpack.c.b16 %v480, %v476
      %v589 = vpack.c.b16 %v481, %v477
      %v590 = vpack.c.b16 %v482, %v478
      %v591 = vpack.c.b16 %v483, %v479
      %v592 = vpack.c.b16 %v488, %v484
      %v593 = vpack.c.b16 %v489, %v485
      %v594 = vpack.c.b16 %v490, %v486
      %v595 = vpack.c.b16 %v491, %v487
      %v596 = vpack.c.b16 %v496, %v492
      %v597 = vpack.c.b16 %v497, %v493
      %v598 = vpack.c.b16 %v498, %v494
      %v599 = vpack.c.b16 %v499, %v495
      %v600 = vpack.c.b16 %v504, %v500
      %v601 = vpack.c.b16 %v505, %v501
      %v602 = vpack.c.b16 %v506, %v502
      %v603 = vpack.c.b16 %v507, %v503
      %v604 = vpack.c.b16 %v512, %v508
      %v605 = vpack.c.b16 %v513, %v509
      %v606 = vpack.c.b16 %v514, %v510
      %v607 = vpack.c.b16 %v515, %v511
      %v608 = vpack.c.b16 %v520, %v516
      %v609 = vpack.c.b16 %v521, %v517
      %v610 = vpack.c.b16 %v522, %v518
      %v611 = vpack.c.b16 %v523, %v519
      %v612 = vpack.c.b16 %v528, %v524
      %v613 = vpack.c.b16 %v529, %v525
      %v614 = vpack.c.b16 %v530, %v526
      %v615 = vpack.c.b16 %v531, %v527
      %v616 = vpack.c.b16 %v536, %v532
      %v617 = vpack.c.b16 %v537, %v533
      %v618 = vpack.c.b16 %v538, %v534
      %v619 = vpack.c.b16 %v539, %v535
      %v620 = vpack.c.b16 %v544, %v540
      %v621 = vpack.c.b16 %v545, %v541
      %v622 = vpack.c.b16 %v546, %v542
      %v623 = vpack.c.b16 %v547, %v543
      %v624 = vpack.c.b16 %v552, %v548
      %v625 = vpack.c.b16 %v553, %v549
      %v626 = vpack.c.b16 %v554, %v550
      %v627 = vpack.c.b16 %v555, %v551
      %v628 = vpack.c.b16 %v560, %v556
      %v629 = vpack.c.b16 %v561, %v557
      %v630 = vpack.c.b16 %v562, %v558
      %v631 = vpack.c.b16 %v563, %v559
      %v632 = vpack.c.b16 %v568, %v564
      %v633 = vpack.c.b16 %v569, %v565
      %v634 = vpack.c.b16 %v570, %v566
      %v635 = vpack.c.b16 %v571, %v567
      %v764 = vunpack.c.l.b16 %v316
      %v765 = vunpack.c.l.b16 %v317
      %v766 = vunpack.c.l.b16 %v318
      %v767 = vunpack.c.l.b16 %v319
      %v768 = vunpack.c.l.b16 %v320
      %v769 = vunpack.c.l.b16 %v321
      %v770 = vunpack.c.l.b16 %v322
      %v771 = vunpack.c.l.b16 %v323
      %v772 = vunpack.c.l.b16 %v324
      %v773 = vunpack.c.l.b16 %v325
      %v774 = vunpack.c.l.b16 %v326
      %v775 = vunpack.c.l.b16 %v327
      %v776 = vunpack.c.l.b16 %v328
      %v777 = vunpack.c.l.b16 %v329
      %v778 = vunpack.c.l.b16 %v330
      %v779 = vunpack.c.l.b16 %v331
      %v780 = vunpack.c.l.b16 %v332
      %v781 = vunpack.c.l.b16 %v333
      %v782 = vunpack.c.l.b16 %v334
      %v783 = vunpack.c.l.b16 %v335
      %v784 = vunpack.c.l.b16 %v336
      %v785 = vunpack.c.l.b16 %v337
      %v786 = vunpack.c.l.b16 %v338
      %v787 = vunpack.c.l.b16 %v339
      %v788 = vunpack.c.l.b16 %v340
      %v789 = vunpack.c.l.b16 %v341
      %v790 = vunpack.c.l.b16 %v342
      %v791 = vunpack.c.l.b16 %v343
      %v792 = vunpack.c.l.b16 %v344
      %v793 = vunpack.c.l.b16 %v345
      %v794 = vunpack.c.l.b16 %v346
      %v795 = vunpack.c.l.b16 %v347
      %v796 = vunpack.c.l.b16 %v348
      %v797 = vunpack.c.l.b16 %v349
      %v798 = vunpack.c.l.b16 %v350
      %v799 = vunpack.c.l.b16 %v351
      %v800 = vunpack.c.l.b16 %v352
      %v801 = vunpack.c.l.b16 %v353
      %v802 = vunpack.c.l.b16 %v354
      %v803 = vunpack.c.l.b16 %v355
      %v804 = vunpack.c.l.b16 %v356
      %v805 = vunpack.c.l.b16 %v357
      %v806 = vunpack.c.l.b16 %v358
      %v807 = vunpack.c.l.b16 %v359
      %v808 = vunpack.c.l.b16 %v360
      %v809 = vunpack.c.l.b16 %v361
      %v810 = vunpack.c.l.b16 %v362
      %v811 = vunpack.c.l.b16 %v363
      %v812 = vunpack.c.l.b16 %v364
      %v813 = vunpack.c.l.b16 %v365
      %v814 = vunpack.c.l.b16 %v366
      %v815 = vunpack.c.l.b16 %v367
      %v816 = vunpack.c.l.b16 %v368
      %v817 = vunpack.c.l.b16 %v369
      %v818 = vunpack.c.l.b16 %v370
      %v819 = vunpack.c.l.b16 %v371
      %v820 = vunpack.c.l.b16 %v372
      %v821 = vunpack.c.l.b16 %v373
      %v822 = vunpack.c.l.b16 %v374
      %v823 = vunpack.c.l.b16 %v375
      %v824 = vunpack.c.l.b16 %v376
      %v825 = vunpack.c.l.b16 %v377
      %v826 = vunpack.c.l.b16 %v378
      %v827 = vunpack.c.l.b16 %v379
      %v828 = vpack.c.b16 %v765, %v764
      %v829 = vpack.c.b16 %v767, %v766
      %v830 = vpack.c.b16 %v769, %v768
      %v831 = vpack.c.b16 %v771, %v770
      %v832 = vpack.c.b16 %v773, %v772
      %v833 = vpack.c.b16 %v775, %v774
      %v834 = vpack.c.b16 %v777, %v776
      %v835 = vpack.c.b16 %v779, %v778
      %v836 = vpack.c.b16 %v781, %v780
      %v837 = vpack.c.b16 %v783, %v782
      %v838 = vpack.c.b16 %v785, %v784
      %v839 = vpack.c.b16 %v787, %v786
      %v840 = vpack.c.b16 %v789, %v788
      %v841 = vpack.c.b16 %v791, %v790
      %v842 = vpack.c.b16 %v793, %v792
      %v843 = vpack.c.b16 %v795, %v794
      %v844 = vpack.c.b16 %v797, %v796
      %v845 = vpack.c.b16 %v799, %v798
      %v846 = vpack.c.b16 %v801, %v800
      %v847 = vpack.c.b16 %v803, %v802
      %v848 = vpack.c.b16 %v805, %v804
      %v849 = vpack.c.b16 %v807, %v806
      %v850 = vpack.c.b16 %v809, %v808
      %v851 = vpack.c.b16 %v811, %v810
      %v852 = vpack.c.b16 %v813, %v812
      %v853 = vpack.c.b16 %v815, %v814
      %v854 = vpack.c.b16 %v817, %v816
      %v855 = vpack.c.b16 %v819, %v818
      %v856 = vpack.c.b16 %v821, %v820
      %v857 = vpack.c.b16 %v823, %v822
      %v858 = vpack.c.b16 %v825, %v824
      %v859 = vpack.c.b16 %v827, %v826
      %892 = vmatprep.subr.bf16.mxu0 0
      %893 = vmatpush1.bf16.msra.mxu0 %v828
      %894 = vmatprep.subr.bf16.mxu0 0
      %895 = vmatpush1.bf16.msra.mxu0 %v829
      %896 = vmatprep.subr.bf16.mxu0 0
      %897 = vmatpush1.bf16.msra.mxu0 %v830
      %898 = vmatprep.subr.bf16.mxu0 0
      %899 = vmatpush1.bf16.msra.mxu0 %v831
      %900 = vmatprep.subr.bf16.mxu0 0
      %901 = vmatpush1.bf16.msra.mxu0 %v832
      %902 = vmatprep.subr.bf16.mxu0 0
      %903 = vmatpush1.bf16.msra.mxu0 %v833
      %904 = vmatprep.subr.bf16.mxu0 0
      %905 = vmatpush1.bf16.msra.mxu0 %v834
      %906 = vmatprep.subr.bf16.mxu0 0
      %907 = vmatpush1.bf16.msra.mxu0 %v835
      %908 = vmatprep.subr.bf16.mxu0 0
      %909 = vmatpush1.bf16.msra.mxu0 %v836
      %910 = vmatprep.subr.bf16.mxu0 0
      %911 = vmatpush1.bf16.msra.mxu0 %v837
      %912 = vmatprep.subr.bf16.mxu0 0
      %913 = vmatpush1.bf16.msra.mxu0 %v838
      %914 = vmatprep.subr.bf16.mxu0 0
      %915 = vmatpush1.bf16.msra.mxu0 %v839
      %916 = vmatprep.subr.bf16.mxu0 0
      %917 = vmatpush1.bf16.msra.mxu0 %v840
      %918 = vmatprep.subr.bf16.mxu0 0
      %919 = vmatpush1.bf16.msra.mxu0 %v841
      %920 = vmatprep.subr.bf16.mxu0 0
      %921 = vmatpush1.bf16.msra.mxu0 %v842
      %922 = vmatprep.subr.bf16.mxu0 0
      %923 = vmatpush1.bf16.msra.mxu0 %v843
      %924 = vmatprep.mubr.bf16.mxu0 %v573
      %925 = vmatmul.mubr.bf16.gmra.mrb[0].mxu0 %v572
      %v926 = vpop.f32.mrb[0].mxu0
      %v927 = vadd.f32 0.0, %v926
      %v928 = vpop.f32.mrb[0].mxu0
      %v929 = vpop.f32.mrb[0].mxu0
      %v930 = vadd.f32 0.0, %v929
      %v931 = vpop.f32.mrb[0].mxu0
      %932 = vmatprep.mubr.bf16.mxu0 %v577
      %933 = vmatmul.mubr.bf16.gmra.mrb[0].mxu0 %v576
      %v934 = vpop.f32.mrb[0].mxu0
      %v935 = vadd.f32 0.0, %v934
      %v936 = vpop.f32.mrb[0].mxu0
      %v937 = vpop.f32.mrb[0].mxu0
      %v938 = vadd.f32 0.0, %v937
      %v939 = vpop.f32.mrb[0].mxu0
      %940 = vmatprep.mubr.bf16.mxu0 %v581
      %941 = vmatmul.mubr.bf16.gmra.mrb[0].mxu0 %v580
      %v942 = vpop.f32.mrb[0].mxu0
      %v943 = vadd.f32 0.0, %v942
      %v944 = vpop.f32.mrb[0].mxu0
      %v945 = vpop.f32.mrb[0].mxu0
      %v946 = vadd.f32 0.0, %v945
      %v947 = vpop.f32.mrb[0].mxu0
      %948 = vmatprep.mubr.bf16.mxu0 %v585
      %949 = vmatmul.mubr.bf16.gmra.mrb[0].mxu0 %v584
      %v950 = vpop.f32.mrb[0].mxu0
      %v951 = vadd.f32 0.0, %v950
      %v952 = vpop.f32.mrb[0].mxu0
      %v953 = vpop.f32.mrb[0].mxu0
      %v954 = vadd.f32 0.0, %v953
      %v955 = vpop.f32.mrb[0].mxu0
      %956 = vmatprep.mubr.bf16.mxu0 %v589
      %957 = vmatmul.mubr.bf16.gmra.mrb[0].mxu0 %v588
      %v958 = vpop.f32.mrb[0].mxu0
      %v959 = vadd.f32 0.0, %v958
      %v960 = vpop.f32.mrb[0].mxu0
      %v961 = vpop.f32.mrb[0].mxu0
      %v962 = vadd.f32 0.0, %v961
      %v963 = vpop.f32.mrb[0].mxu0
      %964 = vmatprep.mubr.bf16.mxu0 %v593
      %965 = vmatmul.mubr.bf16.gmra.mrb[0].mxu0 %v592
      %v966 = vpop.f32.mrb[0].mxu0
      %v967 = vadd.f32 0.0, %v966
      %v968 = vpop.f32.mrb[0].mxu0
      %v969 = vpop.f32.mrb[0].mxu0
      %v970 = vadd.f32 0.0, %v969
      %v971 = vpop.f32.mrb[0].mxu0
      %972 = vmatprep.mubr.bf16.mxu0 %v597
      %973 = vmatmul.mubr.bf16.gmra.mrb[0].mxu0 %v596
      %v974 = vpop.f32.mrb[0].mxu0
      %v975 = vadd.f32 0.0, %v974
      %v976 = vpop.f32.mrb[0].mxu0
      %v977 = vpop.f32.mrb[0].mxu0
      %v978 = vadd.f32 0.0, %v977
      %v979 = vpop.f32.mrb[0].mxu0
      %980 = vmatprep.mubr.bf16.mxu0 %v601
      %981 = vmatmul.mubr.bf16.gmra.mrb[0].mxu0 %v600
      %v982 = vpop.f32.mrb[0].mxu0
      %v983 = vadd.f32 0.0, %v982
      %v984 = vpop.f32.mrb[0].mxu0
      %v985 = vpop.f32.mrb[0].mxu0
      %v986 = vadd.f32 0.0, %v985
      %v987 = vpop.f32.mrb[0].mxu0
      %988 = vmatprep.mubr.bf16.mxu0 %v605
      %989 = vmatmul.mubr.bf16.gmra.mrb[0].mxu0 %v604
      %v990 = vpop.f32.mrb[0].mxu0
      %v991 = vadd.f32 0.0, %v990
      %v992 = vpop.f32.mrb[0].mxu0
      %v993 = vpop.f32.mrb[0].mxu0
      %v994 = vadd.f32 0.0, %v993
      %v995 = vpop.f32.mrb[0].mxu0
      %996 = vmatprep.mubr.bf16.mxu0 %v609
      %997 = vmatmul.mubr.bf16.gmra.mrb[0].mxu0 %v608
      %v998 = vpop.f32.mrb[0].mxu0
      %v999 = vadd.f32 0.0, %v998
      %v1000 = vpop.f32.mrb[0].mxu0
      %v1001 = vpop.f32.mrb[0].mxu0
      %v1002 = vadd.f32 0.0, %v1001
      %v1003 = vpop.f32.mrb[0].mxu0
      %1004 = vmatprep.mubr.bf16.mxu0 %v613
      %1005 = vmatmul.mubr.bf16.gmra.mrb[0].mxu0 %v612
      %v1006 = vpop.f32.mrb[0].mxu0
      %v1007 = vadd.f32 0.0, %v1006
      %v1008 = vpop.f32.mrb[0].mxu0
      %v1009 = vpop.f32.mrb[0].mxu0
      %v1010 = vadd.f32 0.0, %v1009
      %v1011 = vpop.f32.mrb[0].mxu0
      %1012 = vmatprep.mubr.bf16.mxu0 %v617
      %1013 = vmatmul.mubr.bf16.gmra.mrb[0].mxu0 %v616
      %v1014 = vpop.f32.mrb[0].mxu0
      %v1015 = vadd.f32 0.0, %v1014
      %v1016 = vpop.f32.mrb[0].mxu0
      %v1017 = vpop.f32.mrb[0].mxu0
      %v1018 = vadd.f32 0.0, %v1017
      %v1019 = vpop.f32.mrb[0].mxu0
      %1020 = vmatprep.mubr.bf16.mxu0 %v621
      %1021 = vmatmul.mubr.bf16.gmra.mrb[0].mxu0 %v620
      %v1022 = vpop.f32.mrb[0].mxu0
      %v1023 = vadd.f32 0.0, %v1022
      %v1024 = vpop.f32.mrb[0].mxu0
      %v1025 = vpop.f32.mrb[0].mxu0
      %v1026 = vadd.f32 0.0, %v1025
      %v1027 = vpop.f32.mrb[0].mxu0
      %1028 = vmatprep.mubr.bf16.mxu0 %v625
      %1029 = vmatmul.mubr.bf16.gmra.mrb[0].mxu0 %v624
      %v1030 = vpop.f32.mrb[0].mxu0
      %v1031 = vadd.f32 0.0, %v1030
      %v1032 = vpop.f32.mrb[0].mxu0
      %v1033 = vpop.f32.mrb[0].mxu0
      %v1034 = vadd.f32 0.0, %v1033
      %v1035 = vpop.f32.mrb[0].mxu0
      %1036 = vmatprep.mubr.bf16.mxu0 %v629
      %1037 = vmatmul.mubr.bf16.gmra.mrb[0].mxu0 %v628
      %v1038 = vpop.f32.mrb[0].mxu0
      %v1039 = vadd.f32 0.0, %v1038
      %v1040 = vpop.f32.mrb[0].mxu0
      %v1041 = vpop.f32.mrb[0].mxu0
      %v1042 = vadd.f32 0.0, %v1041
      %v1043 = vpop.f32.mrb[0].mxu0
      %1044 = vmatprep.mubr.bf16.mxu0 %v633
      %1045 = vmatmul.mubr.bf16.gmra.mrb[0].mxu0 %v632
      %v1046 = vpop.f32.mrb[0].mxu0
      %v1047 = vadd.f32 0.0, %v1046
      %v1048 = vpop.f32.mrb[0].mxu0
      %v1049 = vpop.f32.mrb[0].mxu0
      %v1050 = vadd.f32 0.0, %v1049
      %v1051 = vpop.f32.mrb[0].mxu0
      %1052 = vdwg.mxu0
      %1053 = vmatprep.subr.bf16.mxu0 0
      %1054 = vmatpush1.bf16.msra.mxu0 %v844
      %1055 = vmatprep.subr.bf16.mxu0 0
      %1056 = vmatpush1.bf16.msra.mxu0 %v845
      %1057 = vmatprep.subr.bf16.mxu0 0
      %1058 = vmatpush1.bf16.msra.mxu0 %v846
      %1059 = vmatprep.subr.bf16.mxu0 0
      %1060 = vmatpush1.bf16.msra.mxu0 %v847
      %1061 = vmatprep.subr.bf16.mxu0 0
      %1062 = vmatpush1.bf16.msra.mxu0 %v848
      %1063 = vmatprep.subr.bf16.mxu0 0
      %1064 = vmatpush1.bf16.msra.mxu0 %v849
      %1065 = vmatprep.subr.bf16.mxu0 0
      %1066 = vmatpush1.bf16.msra.mxu0 %v850
      %1067 = vmatprep.subr.bf16.mxu0 0
      %1068 = vmatpush1.bf16.msra.mxu0 %v851
      %1069 = vmatprep.subr.bf16.mxu0 0
      %1070 = vmatpush1.bf16.msra.mxu0 %v852
      %1071 = vmatprep.subr.bf16.mxu0 0
      %1072 = vmatpush1.bf16.msra.mxu0 %v853
      %1073 = vmatprep.subr.bf16.mxu0 0
      %1074 = vmatpush1.bf16.msra.mxu0 %v854
      %1075 = vmatprep.subr.bf16.mxu0 0
      %1076 = vmatpush1.bf16.msra.mxu0 %v855
      %1077 = vmatprep.subr.bf16.mxu0 0
      %1078 = vmatpush1.bf16.msra.mxu0 %v856
      %1079 = vmatprep.subr.bf16.mxu0 0
      %1080 = vmatpush1.bf16.msra.mxu0 %v857
      %1081 = vmatprep.subr.bf16.mxu0 0
      %1082 = vmatpush1.bf16.msra.mxu0 %v858
      %1083 = vmatprep.subr.bf16.mxu0 0
      %1084 = vmatpush1.bf16.msra.mxu0 %v859
      %1085 = vmatprep.mubr.bf16.mxu0 %v575
      %1086 = vmatmul.mubr.bf16.gmra.mrb[0].mxu0 %v574
      %v1087 = vpop.f32.mrb[0].mxu0
      %v1088 = vadd.f32 %v927, %v1087
      %v1089 = vpop.f32.mrb[0].mxu0
      %v1090 = vpop.f32.mrb[0].mxu0
      %v1091 = vadd.f32 %v930, %v1090
      %v1092 = vpop.f32.mrb[0].mxu0
      %1093 = vmatprep.mubr.bf16.mxu0 %v579
      %1094 = vmatmul.mubr.bf16.gmra.mrb[0].mxu0 %v578
      %v1095 = vpop.f32.mrb[0].mxu0
      %v1096 = vadd.f32 %v935, %v1095
      %v1097 = vpop.f32.mrb[0].mxu0
      %v1098 = vpop.f32.mrb[0].mxu0
      %v1099 = vadd.f32 %v938, %v1098
      %v1100 = vpop.f32.mrb[0].mxu0
      %1101 = vmatprep.mubr.bf16.mxu0 %v583
      %1102 = vmatmul.mubr.bf16.gmra.mrb[0].mxu0 %v582
      %v1103 = vpop.f32.mrb[0].mxu0
      %v1104 = vadd.f32 %v943, %v1103
      %v1105 = vpop.f32.mrb[0].mxu0
      %v1106 = vpop.f32.mrb[0].mxu0
      %v1107 = vadd.f32 %v946, %v1106
      %v1108 = vpop.f32.mrb[0].mxu0
      %1109 = vmatprep.mubr.bf16.mxu0 %v587
      %1110 = vmatmul.mubr.bf16.gmra.mrb[0].mxu0 %v586
      %v1111 = vpop.f32.mrb[0].mxu0
      %v1112 = vadd.f32 %v951, %v1111
      %v1113 = vpop.f32.mrb[0].mxu0
      %v1114 = vpop.f32.mrb[0].mxu0
      %v1115 = vadd.f32 %v954, %v1114
      %v1116 = vpop.f32.mrb[0].mxu0
      %1117 = vmatprep.mubr.bf16.mxu0 %v591
      %1118 = vmatmul.mubr.bf16.gmra.mrb[0].mxu0 %v590
      %v1119 = vpop.f32.mrb[0].mxu0
      %v1120 = vadd.f32 %v959, %v1119
      %v1121 = vpop.f32.mrb[0].mxu0
      %v1122 = vpop.f32.mrb[0].mxu0
      %v1123 = vadd.f32 %v962, %v1122
      %v1124 = vpop.f32.mrb[0].mxu0
      %1125 = vmatprep.mubr.bf16.mxu0 %v595
      %1126 = vmatmul.mubr.bf16.gmra.mrb[0].mxu0 %v594
      %v1127 = vpop.f32.mrb[0].mxu0
      %v1128 = vadd.f32 %v967, %v1127
      %v1129 = vpop.f32.mrb[0].mxu0
      %v1130 = vpop.f32.mrb[0].mxu0
      %v1131 = vadd.f32 %v970, %v1130
      %v1132 = vpop.f32.mrb[0].mxu0
      %1133 = vmatprep.mubr.bf16.mxu0 %v599
      %1134 = vmatmul.mubr.bf16.gmra.mrb[0].mxu0 %v598
      %v1135 = vpop.f32.mrb[0].mxu0
      %v1136 = vadd.f32 %v975, %v1135
      %v1137 = vpop.f32.mrb[0].mxu0
      %v1138 = vpop.f32.mrb[0].mxu0
      %v1139 = vadd.f32 %v978, %v1138
      %v1140 = vpop.f32.mrb[0].mxu0
      %1141 = vmatprep.mubr.bf16.mxu0 %v603
      %1142 = vmatmul.mubr.bf16.gmra.mrb[0].mxu0 %v602
      %v1143 = vpop.f32.mrb[0].mxu0
      %v1144 = vadd.f32 %v983, %v1143
      %v1145 = vpop.f32.mrb[0].mxu0
      %v1146 = vpop.f32.mrb[0].mxu0
      %v1147 = vadd.f32 %v986, %v1146
      %v1148 = vpop.f32.mrb[0].mxu0
      %1149 = vmatprep.mubr.bf16.mxu0 %v607
      %1150 = vmatmul.mubr.bf16.gmra.mrb[0].mxu0 %v606
      %v1151 = vpop.f32.mrb[0].mxu0
      %v1152 = vadd.f32 %v991, %v1151
      %v1153 = vpop.f32.mrb[0].mxu0
      %v1154 = vpop.f32.mrb[0].mxu0
      %v1155 = vadd.f32 %v994, %v1154
      %v1156 = vpop.f32.mrb[0].mxu0
      %1157 = vmatprep.mubr.bf16.mxu0 %v611
      %1158 = vmatmul.mubr.bf16.gmra.mrb[0].mxu0 %v610
      %v1159 = vpop.f32.mrb[0].mxu0
      %v1160 = vadd.f32 %v999, %v1159
      %v1161 = vpop.f32.mrb[0].mxu0
      %v1162 = vpop.f32.mrb[0].mxu0
      %v1163 = vadd.f32 %v1002, %v1162
      %v1164 = vpop.f32.mrb[0].mxu0
      %1165 = vmatprep.mubr.bf16.mxu0 %v615
      %1166 = vmatmul.mubr.bf16.gmra.mrb[0].mxu0 %v614
      %v1167 = vpop.f32.mrb[0].mxu0
      %v1168 = vadd.f32 %v1007, %v1167
      %v1169 = vpop.f32.mrb[0].mxu0
      %v1170 = vpop.f32.mrb[0].mxu0
      %v1171 = vadd.f32 %v1010, %v1170
      %v1172 = vpop.f32.mrb[0].mxu0
      %1173 = vmatprep.mubr.bf16.mxu0 %v619
      %1174 = vmatmul.mubr.bf16.gmra.mrb[0].mxu0 %v618
      %v1175 = vpop.f32.mrb[0].mxu0
      %v1176 = vadd.f32 %v1015, %v1175
      %v1177 = vpop.f32.mrb[0].mxu0
      %v1178 = vpop.f32.mrb[0].mxu0
      %v1179 = vadd.f32 %v1018, %v1178
      %v1180 = vpop.f32.mrb[0].mxu0
      %1181 = vmatprep.mubr.bf16.mxu0 %v623
      %1182 = vmatmul.mubr.bf16.gmra.mrb[0].mxu0 %v622
      %v1183 = vpop.f32.mrb[0].mxu0
      %v1184 = vadd.f32 %v1023, %v1183
      %v1185 = vpop.f32.mrb[0].mxu0
      %v1186 = vpop.f32.mrb[0].mxu0
      %v1187 = vadd.f32 %v1026, %v1186
      %v1188 = vpop.f32.mrb[0].mxu0
      %1189 = vmatprep.mubr.bf16.mxu0 %v627
      %1190 = vmatmul.mubr.bf16.gmra.mrb[0].mxu0 %v626
      %v1191 = vpop.f32.mrb[0].mxu0
      %v1192 = vadd.f32 %v1031, %v1191
      %v1193 = vpop.f32.mrb[0].mxu0
      %v1194 = vpop.f32.mrb[0].mxu0
      %v1195 = vadd.f32 %v1034, %v1194
      %v1196 = vpop.f32.mrb[0].mxu0
      %1197 = vmatprep.mubr.bf16.mxu0 %v631
      %1198 = vmatmul.mubr.bf16.gmra.mrb[0].mxu0 %v630
      %v1199 = vpop.f32.mrb[0].mxu0
      %v1200 = vadd.f32 %v1039, %v1199
      %v1201 = vpop.f32.mrb[0].mxu0
      %v1202 = vpop.f32.mrb[0].mxu0
      %v1203 = vadd.f32 %v1042, %v1202
      %v1204 = vpop.f32.mrb[0].mxu0
      %1205 = vmatprep.mubr.bf16.mxu0 %v635
      %1206 = vmatmul.mubr.bf16.gmra.mrb[0].mxu0 %v634
      %v1207 = vpop.f32.mrb[0].mxu0
      %v1208 = vadd.f32 %v1047, %v1207
      %v1209 = vpop.f32.mrb[0].mxu0
      %v1210 = vpop.f32.mrb[0].mxu0
      %v1211 = vadd.f32 %v1050, %v1210
      %v1212 = vpop.f32.mrb[0].mxu0
      %1213 = vdwg.mxu0
      %v1214 = vadd.f32 %v216, %v1088
      %v1215 = vadd.f32 %v217, %v1091
      %v1216 = vadd.f32 %v218, %v1096
      %v1217 = vadd.f32 %v219, %v1099
      %v1218 = vadd.f32 %v220, %v1104
      %v1219 = vadd.f32 %v221, %v1107
      %v1220 = vadd.f32 %v222, %v1112
      %v1221 = vadd.f32 %v223, %v1115
      %v1222 = vadd.f32 %v224, %v1120
      %v1223 = vadd.f32 %v225, %v1123
      %v1224 = vadd.f32 %v226, %v1128
      %v1225 = vadd.f32 %v227, %v1131
      %v1226 = vadd.f32 %v228, %v1136
      %v1227 = vadd.f32 %v229, %v1139
      %v1228 = vadd.f32 %v230, %v1144
      %v1229 = vadd.f32 %v231, %v1147
      %v1230 = vadd.f32 %v232, %v1152
      %v1231 = vadd.f32 %v233, %v1155
      %v1232 = vadd.f32 %v234, %v1160
      %v1233 = vadd.f32 %v235, %v1163
      %v1234 = vadd.f32 %v236, %v1168
      %v1235 = vadd.f32 %v237, %v1171
      %v1236 = vadd.f32 %v238, %v1176
      %v1237 = vadd.f32 %v239, %v1179
      %v1238 = vadd.f32 %v240, %v1184
      %v1239 = vadd.f32 %v241, %v1187
      %v1240 = vadd.f32 %v242, %v1192
      %v1241 = vadd.f32 %v243, %v1195
      %v1242 = vadd.f32 %v244, %v1200
      %v1243 = vadd.f32 %v245, %v1203
      %v1244 = vadd.f32 %v246, %v1208
      %v1245 = vadd.f32 %v247, %v1211
      %1246 = vst [vmem:[#allocation2] sm:$0xff] %v1214
      %1247 = vst [vmem:[#allocation2 + $0x8] sm:$0xff] %v1215
      %1248 = vst [vmem:[#allocation2 + $0x10] sm:$0xff] %v1216
      %1249 = vst [vmem:[#allocation2 + $0x18] sm:$0xff] %v1217
      %1250 = vst [vmem:[#allocation2 + $0x20] sm:$0xff] %v1218
      %1251 = vst [vmem:[#allocation2 + $0x28] sm:$0xff] %v1219
      %1252 = vst [vmem:[#allocation2 + $0x30] sm:$0xff] %v1220
      %1253 = vst [vmem:[#allocation2 + $0x38] sm:$0xff] %v1221
      %1254 = vst [vmem:[#allocation2 + $0x40] sm:$0xff] %v1222
      %1255 = vst [vmem:[#allocation2 + $0x48] sm:$0xff] %v1223
      %1256 = vst [vmem:[#allocation2 + $0x50] sm:$0xff] %v1224
      %1257 = vst [vmem:[#allocation2 + $0x58] sm:$0xff] %v1225
      %1258 = vst [vmem:[#allocation2 + $0x60] sm:$0xff] %v1226
      %1259 = vst [vmem:[#allocation2 + $0x68] sm:$0xff] %v1227
      %1260 = vst [vmem:[#allocation2 + $0x70] sm:$0xff] %v1228
      %1261 = vst [vmem:[#allocation2 + $0x78] sm:$0xff] %v1229
      %1262 = vst [vmem:[#allocation2 + $0x80] sm:$0xff] %v1230
      %1263 = vst [vmem:[#allocation2 + $0x88] sm:$0xff] %v1231
      %1264 = vst [vmem:[#allocation2 + $0x90] sm:$0xff] %v1232
      %1265 = vst [vmem:[#allocation2 + $0x98] sm:$0xff] %v1233
      %1266 = vst [vmem:[#allocation2 + $0xa0] sm:$0xff] %v1234
      %1267 = vst [vmem:[#allocation2 + $0xa8] sm:$0xff] %v1235
      %1268 = vst [vmem:[#allocation2 + $0xb0] sm:$0xff] %v1236
      %1269 = vst [vmem:[#allocation2 + $0xb8] sm:$0xff] %v1237
      %1270 = vst [vmem:[#allocation2 + $0xc0] sm:$0xff] %v1238
      %1271 = vst [vmem:[#allocation2 + $0xc8] sm:$0xff] %v1239
      %1272 = vst [vmem:[#allocation2 + $0xd0] sm:$0xff] %v1240
      %1273 = vst [vmem:[#allocation2 + $0xd8] sm:$0xff] %v1241
      %1274 = vst [vmem:[#allocation2 + $0xe0] sm:$0xff] %v1242
      %1275 = vst [vmem:[#allocation2 + $0xe8] sm:$0xff] %v1243
      %1276 = vst [vmem:[#allocation2 + $0xf0] sm:$0xff] %v1244
      %1277 = vst [vmem:[#allocation2 + $0xf8] sm:$0xff] %v1245
      // Predicated region
      $region33: #{gcn_model_forward.3} parent=27 // pred_check
        %p1278 = pneg %p179
      $region34: #{gcn_model_forward.3} parent=27 // pred_check_branch
        %1280 = sbr.rel (%p1278) target = $region36
      $region35: #{gcn_model_forward.3} parent=27 // pred_region
        %v1281 = vld [vmem:[#allocation2] sm:$0xff]
        %v1282 = vld [vmem:[#allocation2 + $0x8] sm:$0xff]
        %v1283 = vld [vmem:[#allocation2 + $0x10] sm:$0xff]
        %v1284 = vld [vmem:[#allocation2 + $0x18] sm:$0xff]
        %v1285 = vld [vmem:[#allocation2 + $0x20] sm:$0xff]
        %v1286 = vld [vmem:[#allocation2 + $0x28] sm:$0xff]
        %v1287 = vld [vmem:[#allocation2 + $0x30] sm:$0xff]
        %v1288 = vld [vmem:[#allocation2 + $0x38] sm:$0xff]
        %v1289 = vld [vmem:[#allocation2 + $0x40] sm:$0xff]
        %v1290 = vld [vmem:[#allocation2 + $0x48] sm:$0xff]
        %v1291 = vld [vmem:[#allocation2 + $0x50] sm:$0xff]
        %v1292 = vld [vmem:[#allocation2 + $0x58] sm:$0xff]
        %v1293 = vld [vmem:[#allocation2 + $0x60] sm:$0xff]
        %v1294 = vld [vmem:[#allocation2 + $0x68] sm:$0xff]
        %v1295 = vld [vmem:[#allocation2 + $0x70] sm:$0xff]
        %v1296 = vld [vmem:[#allocation2 + $0x78] sm:$0xff]
        %v1297 = vld [vmem:[#allocation2 + $0x80] sm:$0xff]
        %v1298 = vld [vmem:[#allocation2 + $0x88] sm:$0xff]
        %v1299 = vld [vmem:[#allocation2 + $0x90] sm:$0xff]
        %v1300 = vld [vmem:[#allocation2 + $0x98] sm:$0xff]
        %v1301 = vld [vmem:[#allocation2 + $0xa0] sm:$0xff]
        %v1302 = vld [vmem:[#allocation2 + $0xa8] sm:$0xff]
        %v1303 = vld [vmem:[#allocation2 + $0xb0] sm:$0xff]
        %v1304 = vld [vmem:[#allocation2 + $0xb8] sm:$0xff]
        %v1305 = vld [vmem:[#allocation2 + $0xc0] sm:$0xff]
        %v1306 = vld [vmem:[#allocation2 + $0xc8] sm:$0xff]
        %v1307 = vld [vmem:[#allocation2 + $0xd0] sm:$0xff]
        %v1308 = vld [vmem:[#allocation2 + $0xd8] sm:$0xff]
        %v1309 = vld [vmem:[#allocation2 + $0xe0] sm:$0xff]
        %v1310 = vld [vmem:[#allocation2 + $0xe8] sm:$0xff]
        %v1311 = vld [vmem:[#allocation2 + $0xf0] sm:$0xff]
        %v1312 = vld [vmem:[#allocation2 + $0xf8] sm:$0xff]
        %v1313 = vmax.f32 %v1281, 0.0
        %v1314 = vmax.f32 %v1282, 0.0
        %v1315 = vmax.f32 %v1283, 0.0
        %v1316 = vmax.f32 %v1284, 0.0
        %v1317 = vmax.f32 %v1285, 0.0
        %v1318 = vmax.f32 %v1286, 0.0
        %v1319 = vmax.f32 %v1287, 0.0
        %v1320 = vmax.f32 %v1288, 0.0
        %v1321 = vmax.f32 %v1289, 0.0
        %v1322 = vmax.f32 %v1290, 0.0
        %v1323 = vmax.f32 %v1291, 0.0
        %v1324 = vmax.f32 %v1292, 0.0
        %v1325 = vmax.f32 %v1293, 0.0
        %v1326 = vmax.f32 %v1294, 0.0
        %v1327 = vmax.f32 %v1295, 0.0
        %v1328 = vmax.f32 %v1296, 0.0
        %v1329 = vmax.f32 %v1297, 0.0
        %v1330 = vmax.f32 %v1298, 0.0
        %v1331 = vmax.f32 %v1299, 0.0
        %v1332 = vmax.f32 %v1300, 0.0
        %v1333 = vmax.f32 %v1301, 0.0
        %v1334 = vmax.f32 %v1302, 0.0
        %v1335 = vmax.f32 %v1303, 0.0
        %v1336 = vmax.f32 %v1304, 0.0
        %v1337 = vmax.f32 %v1305, 0.0
        %v1338 = vmax.f32 %v1306, 0.0
        %v1339 = vmax.f32 %v1307, 0.0
        %v1340 = vmax.f32 %v1308, 0.0
        %v1341 = vmax.f32 %v1309, 0.0
        %v1342 = vmax.f32 %v1310, 0.0
        %v1343 = vmax.f32 %v1311, 0.0
        %v1344 = vmax.f32 %v1312, 0.0
        %v1345 = vpack.c.bf16 %v1314, %v1313
        %v1346 = vpack.c.bf16 %v1316, %v1315
        %v1347 = vpack.c.bf16 %v1318, %v1317
        %v1348 = vpack.c.bf16 %v1320, %v1319
        %v1349 = vpack.c.bf16 %v1322, %v1321
        %v1350 = vpack.c.bf16 %v1324, %v1323
        %v1351 = vpack.c.bf16 %v1326, %v1325
        %v1352 = vpack.c.bf16 %v1328, %v1327
        %v1353 = vpack.c.bf16 %v1330, %v1329
        %v1354 = vpack.c.bf16 %v1332, %v1331
        %v1355 = vpack.c.bf16 %v1334, %v1333
        %v1356 = vpack.c.bf16 %v1336, %v1335
        %v1357 = vpack.c.bf16 %v1338, %v1337
        %v1358 = vpack.c.bf16 %v1340, %v1339
        %v1359 = vpack.c.bf16 %v1342, %v1341
        %v1360 = vpack.c.bf16 %v1344, %v1343
        %v1377 = vunpack.c.l.b16 %v1345
        %v1378 = vunpack.c.h.b16 %v1345
        %v1379 = vunpack.c.l.b16 %v1346
        %v1380 = vunpack.c.h.b16 %v1346
        %v1381 = vunpack.c.l.b16 %v1347
        %v1382 = vunpack.c.h.b16 %v1347
        %v1383 = vunpack.c.l.b16 %v1348
        %v1384 = vunpack.c.h.b16 %v1348
        %v1385 = vunpack.c.l.b16 %v1349
        %v1386 = vunpack.c.h.b16 %v1349
        %v1387 = vunpack.c.l.b16 %v1350
        %v1388 = vunpack.c.h.b16 %v1350
        %v1389 = vunpack.c.l.b16 %v1351
        %v1390 = vunpack.c.h.b16 %v1351
        %v1391 = vunpack.c.l.b16 %v1352
        %v1392 = vunpack.c.h.b16 %v1352
        %v1393 = vunpack.c.l.b16 %v1353
        %v1394 = vunpack.c.h.b16 %v1353
        %v1395 = vunpack.c.l.b16 %v1354
        %v1396 = vunpack.c.h.b16 %v1354
        %v1397 = vunpack.c.l.b16 %v1355
        %v1398 = vunpack.c.h.b16 %v1355
        %v1399 = vunpack.c.l.b16 %v1356
        %v1400 = vunpack.c.h.b16 %v1356
        %v1401 = vunpack.c.l.b16 %v1357
        %v1402 = vunpack.c.h.b16 %v1357
        %v1403 = vunpack.c.l.b16 %v1358
        %v1404 = vunpack.c.h.b16 %v1358
        %v1405 = vunpack.c.l.b16 %v1359
        %v1406 = vunpack.c.h.b16 %v1359
        %v1407 = vunpack.c.l.b16 %v1360
        %v1408 = vunpack.c.h.b16 %v1360
        %v1409 = vpack.c.b16 %v1377, %v1377
        %v1410 = vpack.c.b16 %v1378, %v1378
        %v1411 = vpack.c.b16 %v1379, %v1379
        %v1412 = vpack.c.b16 %v1380, %v1380
        %v1413 = vpack.c.b16 %v1381, %v1381
        %v1414 = vpack.c.b16 %v1382, %v1382
        %v1415 = vpack.c.b16 %v1383, %v1383
        %v1416 = vpack.c.b16 %v1384, %v1384
        %v1417 = vpack.c.b16 %v1385, %v1385
        %v1418 = vpack.c.b16 %v1386, %v1386
        %v1419 = vpack.c.b16 %v1387, %v1387
        %v1420 = vpack.c.b16 %v1388, %v1388
        %v1421 = vpack.c.b16 %v1389, %v1389
        %v1422 = vpack.c.b16 %v1390, %v1390
        %v1423 = vpack.c.b16 %v1391, %v1391
        %v1424 = vpack.c.b16 %v1392, %v1392
        %v1425 = vpack.c.b16 %v1393, %v1393
        %v1426 = vpack.c.b16 %v1394, %v1394
        %v1427 = vpack.c.b16 %v1395, %v1395
        %v1428 = vpack.c.b16 %v1396, %v1396
        %v1429 = vpack.c.b16 %v1397, %v1397
        %v1430 = vpack.c.b16 %v1398, %v1398
        %v1431 = vpack.c.b16 %v1399, %v1399
        %v1432 = vpack.c.b16 %v1400, %v1400
        %v1433 = vpack.c.b16 %v1401, %v1401
        %v1434 = vpack.c.b16 %v1402, %v1402
        %v1435 = vpack.c.b16 %v1403, %v1403
        %v1436 = vpack.c.b16 %v1404, %v1404
        %v1437 = vpack.c.b16 %v1405, %v1405
        %v1438 = vpack.c.b16 %v1406, %v1406
        %v1439 = vpack.c.b16 %v1407, %v1407
        %v1440 = vpack.c.b16 %v1408, %v1408
        %1473 = vst [vmem:[%s176] sm:$0xf] %v1409
        %1474 = vst [vmem:[%s176 + $0x4] sm:$0xf] %v1410
        %1475 = vst [vmem:[%s176 + $0x8] sm:$0xf] %v1411
        %1476 = vst [vmem:[%s176 + $0xc] sm:$0xf] %v1412
        %1477 = vst [vmem:[%s176 + $0x10] sm:$0xf] %v1413
        %1478 = vst [vmem:[%s176 + $0x14] sm:$0xf] %v1414
        %1479 = vst [vmem:[%s176 + $0x18] sm:$0xf] %v1415
        %1480 = vst [vmem:[%s176 + $0x1c] sm:$0xf] %v1416
        %1481 = vst [vmem:[%s176 + $0x20] sm:$0xf] %v1417
        %1482 = vst [vmem:[%s176 + $0x24] sm:$0xf] %v1418
        %1483 = vst [vmem:[%s176 + $0x28] sm:$0xf] %v1419
        %1484 = vst [vmem:[%s176 + $0x2c] sm:$0xf] %v1420
        %1485 = vst [vmem:[%s176 + $0x30] sm:$0xf] %v1421
        %1486 = vst [vmem:[%s176 + $0x34] sm:$0xf] %v1422
        %1487 = vst [vmem:[%s176 + $0x38] sm:$0xf] %v1423
        %1488 = vst [vmem:[%s176 + $0x3c] sm:$0xf] %v1424
        %1489 = vst [vmem:[%s176 + $0x40] sm:$0xf] %v1425
        %1490 = vst [vmem:[%s176 + $0x44] sm:$0xf] %v1426
        %1491 = vst [vmem:[%s176 + $0x48] sm:$0xf] %v1427
        %1492 = vst [vmem:[%s176 + $0x4c] sm:$0xf] %v1428
        %1493 = vst [vmem:[%s176 + $0x50] sm:$0xf] %v1429
        %1494 = vst [vmem:[%s176 + $0x54] sm:$0xf] %v1430
        %1495 = vst [vmem:[%s176 + $0x58] sm:$0xf] %v1431
        %1496 = vst [vmem:[%s176 + $0x5c] sm:$0xf] %v1432
        %1497 = vst [vmem:[%s176 + $0x60] sm:$0xf] %v1433
        %1498 = vst [vmem:[%s176 + $0x64] sm:$0xf] %v1434
        %1499 = vst [vmem:[%s176 + $0x68] sm:$0xf] %v1435
        %1500 = vst [vmem:[%s176 + $0x6c] sm:$0xf] %v1436
        %1501 = vst [vmem:[%s176 + $0x70] sm:$0xf] %v1437
        %1502 = vst [vmem:[%s176 + $0x74] sm:$0xf] %v1438
        %1503 = vst [vmem:[%s176 + $0x78] sm:$0xf] %v1439
        %1504 = vst [vmem:[%s176 + $0x7c] sm:$0xf] %v1440
      $region36: #{gcn_model_forward.3} parent=27 // pred_fallthru
        _
      %s1505 = smul.u32 32, %s17
      %p1506 = scmp.lt.s32.totalorder %s1505, 63
      %s1507 = scalar_select %p1506, %s1505, 63
      %s1508 = smul.addr %s1507, 4
      %s1509 = scalar_lea.vmem %s2, %s1508
      // Predicated region
      $region37: #{gcn_model_forward.3} parent=27 // pred_check
        %p1510 = pneg %p92
      $region38: #{gcn_model_forward.3} parent=27 // pred_check_branch
        %1512 = sbr.rel (%p1510) target = $region40
      $region39: #{gcn_model_forward.3} parent=27 // pred_region
        %s1513 = smul.u32 32, %s17
      $region40: #{gcn_model_forward.3} parent=27 // pred_fallthru
        _
    $region28: #{gcn_model_forward.3} parent=5 // pred_fallthru
      _
    %p1514 = scmp.le.s32.totalorder 2, %s8
    // Predicated region
    $region41: #{gcn_model_forward.3} parent=5 // pred_check
      %p1515 = pneg %p1514
    $region42: #{gcn_model_forward.3} parent=5 // pred_check_branch
      %1517 = sbr.rel (%p1515) target = $region44
    $region43: #{gcn_model_forward.3} parent=5 // pred_region
      %s1518 = ssub.s32 %s8, 2
      // Predicated region
      $region45: #{gcn_model_forward.3} parent=43 // pred_check
        %p1519 = pneg %p98
      $region46: #{gcn_model_forward.3} parent=43 // pred_check_branch
        %1521 = sbr.rel (%p1519) target = $region48
      $region47: #{gcn_model_forward.3} parent=43 // pred_region
        %s1522 = smul.u32 32, %s19
        %p1523 = scmp.lt.s32.totalorder %s1522, 63
        %s1524 = scalar_select %p1523, %s1522, 63
        %s1525 = smul.addr %s1524, 4
        %s1526 = scalar_lea.vmem %s2, %s1525
      $region48: #{gcn_model_forward.3} parent=43 // pred_fallthru
        _
    $region44: #{gcn_model_forward.3} parent=5 // pred_fallthru
      _
  $region6: #{gcn_model_forward.3} parent=0 // loop_footer
    %s12 = sadd.s32 1, %s8
  $region7: #{gcn_model_forward.3} parent=0 // loop_footer_branch
    %7 = sbr.rel target = $region3
  $region8: #{gcn_model_forward.3} parent=0 // loop_exit
    _

</llo_original>
